<compile_context>
chip_gen: v5e
topology: v5e:2x2
jax: 0.10.0
libtpu: 0.0.40
codegen_flags: <defaults>
</compile_context>

<pallas_src>
import numpy as np
import jax
import jax.numpy as jnp
from jax.experimental import pallas as pl
from jax.experimental.pallas import tpu as pltpu

# ---- model hyper-parameters (small, consistent with the module structure) ----
IN_DIM = 32
HIDDEN_DIMS = [32, 32, 32, 32]
SKIP_WHICH = [1, 2, 3]
SKIP_DIM = 32
SOUT = 1
OUT_NUM = len(SKIP_WHICH) * SKIP_DIM     # 96
PAD_OUT = 128                            # lane-dense packed output width (96 feat + logits + sigmoid + pad)
TARGET_ROWS = 128                        # target rows (graphs * nodes) stacked per grid step

# Structural assumptions the fused kernel relies on.
assert SKIP_WHICH == list(range(1, len(SKIP_WHICH) + 1))
assert all(h == IN_DIM for h in HIDDEN_DIMS)
assert PAD_OUT == OUT_NUM + SKIP_DIM and SKIP_DIM >= 2   # packed-output layout invariant


def gcn_net2_kernel(x_ref, a_ref,
                    emb_w_ref, emb_b_ref,
                    w1_ref, b1_ref,
                    cw2_ref, cb2_ref,
                    cw3_ref, cb3_ref,
                    ws3_ref, bs3_ref,
                    ro_ref,
                    out_ref):
    """One batch-tile (Bt graphs stacked along rows) per grid step."""
    f32, bf16 = jnp.float32, jnp.bfloat16

    x = x_ref[0]                                             # (M, D) bf16
    # A shipped as int8 edge counts; bf16 is exact for counts < 128.
    a = a_ref[0].astype(f32).astype(bf16)                    # (M, M) bf16

    # embedding_h (no activation after it in the reference module)
    h = (jnp.dot(x, emb_w_ref[...], preferred_element_type=f32) + emb_b_ref[...]).astype(bf16)

    # GCN layer 1 (no skip connection taps h0)
    xw = jnp.dot(h, w1_ref[...], preferred_element_type=f32).astype(bf16)
    h = jnp.maximum(jnp.dot(a, xw, preferred_element_type=f32) + b1_ref[...], 0.0).astype(bf16)   # h1

    # GCN layer 2 fused with skip-conv 1 (both consume h1 and A): RHS = [W2 | S1]
    xw = jnp.dot(h, cw2_ref[...], preferred_element_type=f32).astype(bf16)                        # (M, 64)
    agg = jnp.maximum(jnp.dot(a, xw, preferred_element_type=f32) + cb2_ref[...], 0.0)             # (M, 64)
    h = agg[:, :IN_DIM].astype(bf16)                                                              # h2
    skip1 = agg[:, IN_DIM:]                                                                       # (M, 32) f32

    # GCN layer 3 fused with skip-conv 2: RHS = [W3 | S2]
    xw = jnp.dot(h, cw3_ref[...], preferred_element_type=f32).astype(bf16)
    agg = jnp.maximum(jnp.dot(a, xw, preferred_element_type=f32) + cb3_ref[...], 0.0)
    h = agg[:, :IN_DIM].astype(bf16)                                                              # h3
    skip2 = agg[:, IN_DIM:]

    # skip-conv 3 (taps h3); GCN layer 4 is dead compute in the module and is dropped.
    xw = jnp.dot(h, ws3_ref[...], preferred_element_type=f32).astype(bf16)
    skip3 = jnp.maximum(jnp.dot(a, xw, preferred_element_type=f32) + bs3_ref[...], 0.0)

    out96 = jnp.concatenate([skip1, skip2, skip3], axis=-1)                                       # (M, 96)

    # readout_mlp (no bias): VPU multiply + lane reduction instead of an MXU op with a 1-wide result
    logits = jnp.sum(out96 * ro_ref[...], axis=-1, keepdims=True)                                 # (M, 1)
    sig = jax.nn.sigmoid(logits)

    # lane-dense (M,128) store: feat lanes 0:95, logits lane 96, sigmoid lane 97, zeros elsewhere
    lane = jax.lax.broadcasted_iota(jnp.int32, (out96.shape[0], SKIP_DIM), 1)
    tail = jnp.where(lane == 0, logits, 0.0) + jnp.where(lane == 1, sig, 0.0)                     # (M, 32)
    out_ref[0] = jnp.concatenate([out96, tail], axis=-1)                                          # (M, 128)


def _pack_params(params):
    """Build fused / bf16 kernel parameters from the module-shaped parameter dict."""
    bf16 = jnp.bfloat16
    pk = {
        "emb_w": params["emb_w"].astype(bf16),
        "emb_b": params["emb_b"],
        "w1": params["gcn_w"][0].astype(bf16),
        "b1": params["gcn_b"][0],
        # layer l+1 and skip-conv l share LHS (h_{l+1-1}) and A -> concatenate their weights/biases
        "cw2": jnp.concatenate([params["gcn_w"][1], params["sc_w"][0]], axis=1).astype(bf16),  # (32, 64)
        "cb2": jnp.concatenate([params["gcn_b"][1], params["sc_b"][0]], axis=1),               # (1, 64)
        "cw3": jnp.concatenate([params["gcn_w"][2], params["sc_w"][1]], axis=1).astype(bf16),
        "cb3": jnp.concatenate([params["gcn_b"][2], params["sc_b"][1]], axis=1),
        "ws3": params["sc_w"][2].astype(bf16),
        "bs3": params["sc_b"][2],
        "ro": params["ro_w"][:, 0][None, :],                                                   # (1, 96) f32
    }
    return pk


def gcn_net2_forward_batched(x, a, params, graphs_per_block=None):
    """Batched forward. x: (B, N, D) float, a: (B, N, N) dense aggregation matrices (edge counts)."""
    b, n, d = x.shape
    assert d == IN_DIM and a.shape == (b, n, n)

    if graphs_per_block is None:
        graphs_per_block = max(1, min(b, max(1, TARGET_ROWS // n)))
    bt = int(graphs_per_block)
    num_tiles = -(-b // bt)           # ceil(B / Bt)
    pb = num_tiles * bt
    m = bt * n

    xb = x.astype(jnp.bfloat16)
    af = jnp.asarray(a, jnp.float32)
    if pb != b:                       # pad with empty graphs; block-diag A keeps them isolated
        xb = jnp.concatenate([xb, jnp.zeros((pb - b, n, d), xb.dtype)], axis=0)
        af = jnp.concatenate([af, jnp.zeros((pb - b, n, n), af.dtype)], axis=0)

    x_tiles = xb.reshape(num_tiles, m, d)

    # Block-diagonal batched aggregation matrix per grid step (disjoint-union batching, like PyG),
    # shipped as int8 edge counts (exact for multiplicity < 128) to halve the A HBM traffic.
    a_t = af.reshape(num_tiles, bt, n, n)
    eye = jnp.eye(bt, dtype=jnp.float32)
    a_big = (a_t[:, :, None, :, :] * eye[None, :, :, None, None]).transpose(0, 1, 3, 2, 4)
    a_big = a_big.reshape(num_tiles, m, m).astype(jnp.int8)

    pk = _pack_params(params)
    weights = [pk["emb_w"], pk["emb_b"], pk["w1"], pk["b1"], pk["cw2"], pk["cb2"],
               pk["cw3"], pk["cb3"], pk["ws3"], pk["bs3"], pk["ro"]]

    def full(arr):                    # whole-array block, replicated across the batch grid
        nd = arr.ndim
        return pl.BlockSpec(arr.shape, lambda t, _nd=nd: (0,) * _nd)

    in_specs = ([pl.BlockSpec((1, m, d), lambda t: (t, 0, 0)),        # x rows for this batch tile
                 pl.BlockSpec((1, m, m), lambda t: (t, 0, 0))]        # block-diag A (int8)
                + [full(w) for w in weights])
    out_specs = pl.BlockSpec((1, m, PAD_OUT), lambda t: (t, 0, 0))

    packed = pl.pallas_call(
        gcn_net2_kernel,
        out_shape=jax.ShapeDtypeStruct((num_tiles, m, PAD_OUT), jnp.float32),
        grid_spec=pltpu.PrefetchScalarGridSpec(
            num_scalar_prefetch=0, grid=(num_tiles,),
            in_specs=in_specs, out_specs=out_specs),
        compiler_params=pltpu.CompilerParams(
            dimension_semantics=("parallel",)),   # >=2 grid steps lets v7x use both TensorCores
    )(x_tiles, a_big, *weights)

    packed = packed.reshape(pb, n, PAD_OUT)[:b]
    out_feat = packed[..., :OUT_NUM]              # (B, N, 96)
    logits = packed[..., OUT_NUM]                 # (B, N)
    sig = packed[..., OUT_NUM + 1]                # (B, N)
    return out_feat, logits, sig


def build_agg_matrix(edge_index, n):
    """PyG add-aggregation at the target node: A[dst, src] += 1 (normalize=False)."""
    ei = np.asarray(edge_index)
    a = np.zeros((n, n), np.float32)
    np.add.at(a, (ei[1], ei[0]), 1.0)
    assert a.max() < 128, "int8 A path requires edge multiplicity < 128 per (src, dst) pair"
    return a


def gcn_net2_forward(x, edge_index, params):
    """Single-graph wrapper matching the PyTorch module's forward(data)."""
    n = x.shape[0]
    a = jnp.asarray(build_agg_matrix(edge_index, n))
    out_feat, logits, sig = gcn_net2_forward_batched(x[None], a[None], params)
    return out_feat[0], logits[0], sig[0]


def gcn_net2_reference(x, a, params):
    """Pure-JAX f32 reference (computes all 4 GCN layers like the PyTorch module; layer 4 is unused)."""
    h = x @ params["emb_w"] + params["emb_b"]
    feats = [h]
    for l in range(len(HIDDEN_DIMS)):
        h = jax.nn.relu(a @ (h @ params["gcn_w"][l]) + params["gcn_b"][l])
        feats.append(h)
    sc = []
    for i, which in enumerate(SKIP_WHICH):
        sc.append(jax.nn.relu(a @ (feats[which] @ params["sc_w"][i]) + params["sc_b"][i]))
    out_feat = jnp.concatenate(sc, axis=1)
    logits = (out_feat @ params["ro_w"]).reshape(-1)
    return out_feat, logits, jax.nn.sigmoid(logits)


def init_params(key):
    """Deterministic synthetic parameters matching the module's shapes.

    Weights stored pre-transposed (in_features, out_features) so the kernel computes x @ W;
    biases are (1, out_features) for lane broadcasting.
    """
    n_keys = 2 + 2 * len(HIDDEN_DIMS) + 2 * len(SKIP_WHICH) + 1   # 17
    ks = jax.random.split(key, n_keys)
    k = iter(ks)

    def w(shape, kk, scale=0.1):
        return (scale * jax.random.normal(kk, shape)).astype(jnp.float32)

    params = {}
    params["emb_w"] = w((IN_DIM, IN_DIM), next(k))
    params["emb_b"] = w((1, IN_DIM), next(k))
    params["gcn_w"] = jnp.stack([w((IN_DIM, IN_DIM), next(k)) for _ in HIDDEN_DIMS])
    params["gcn_b"] = jnp.stack([w((1, IN_DIM), next(k)) for _ in HIDDEN_DIMS])
    params["sc_w"] = jnp.stack([w((IN_DIM, SKIP_DIM), next(k)) for _ in SKIP_WHICH])
    params["sc_b"] = jnp.stack([w((1, SKIP_DIM), next(k)) for _ in SKIP_WHICH])
    params["ro_w"] = w((OUT_NUM, SOUT), next(k))
    return params


if __name__ == "__main__":
    key = jax.random.PRNGKey(0)
    k_param, k_x, k_e = jax.random.split(key, 3)

    B = 16    # graphs (with N=16 -> 8 graphs per grid step, 2 parallel grid steps)
    N = 16    # nodes per graph
    E = 48    # directed edges per graph

    params = init_params(k_param)
    x = jax.random.normal(k_x, (B, N, IN_DIM), dtype=jnp.float32)

    ek = jax.random.split(k_e, 2 * B)
    edge_indices = [
        np.stack([np.asarray(jax.random.randint(ek[2 * i], (E,), 0, N, dtype=jnp.int32)),
                  np.asarray(jax.random.randint(ek[2 * i + 1], (E,), 0, N, dtype=jnp.int32))], axis=0)
        for i in range(B)
    ]
    a = jnp.asarray(np.stack([build_agg_matrix(ei, N) for ei in edge_indices], axis=0))   # (B, N, N)

    fwd = jax.jit(gcn_net2_forward_batched)
    out_feat, logits, sig = fwd(x, a, params)
    jax.block_until_ready((out_feat, logits, sig))

    assert out_feat.shape == (B, N, OUT_NUM)
    assert logits.shape == (B, N)
    assert sig.shape == (B, N)

    # correctness vs pure-JAX f32 reference; loose tolerances are INTENTIONAL (all matmuls run in bf16)
    ref_of, ref_lg, ref_sg = [], [], []
    for bi in range(B):
        o, lg, sg = gcn_net2_reference(x[bi], a[bi], params)
        ref_of.append(o); ref_lg.append(lg); ref_sg.append(sg)
    np.testing.assert_allclose(np.asarray(out_feat), np.stack(ref_of), rtol=0.1, atol=0.06)
    np.testing.assert_allclose(np.asarray(logits), np.stack(ref_lg), rtol=0.1, atol=0.06)
    np.testing.assert_allclose(np.asarray(sig), np.stack(ref_sg), rtol=0.1, atol=0.06)

    print("KERNEL_OK")
</pallas_src>

<mosaic_0001>
module attributes {stable_mosaic.version = 11 : i64} {
  func.func @gcn_net2_kernel(%arg0: i32, %arg1: memref<1x128x32xbf16, #tpu.memory_space<vmem>>, %arg2: memref<1x128x128xi8, #tpu.memory_space<vmem>>, %arg3: memref<32x32xbf16, #tpu.memory_space<vmem>>, %arg4: memref<1x32xf32, #tpu.memory_space<vmem>>, %arg5: memref<32x32xbf16, #tpu.memory_space<vmem>>, %arg6: memref<1x32xf32, #tpu.memory_space<vmem>>, %arg7: memref<32x64xbf16, #tpu.memory_space<vmem>>, %arg8: memref<1x64xf32, #tpu.memory_space<vmem>>, %arg9: memref<32x64xbf16, #tpu.memory_space<vmem>>, %arg10: memref<1x64xf32, #tpu.memory_space<vmem>>, %arg11: memref<32x32xbf16, #tpu.memory_space<vmem>>, %arg12: memref<1x32xf32, #tpu.memory_space<vmem>>, %arg13: memref<1x96xf32, #tpu.memory_space<vmem>>, %arg14: memref<1x128x128xf32, #tpu.memory_space<vmem>>) attributes {dimension_semantics = [#tpu.dimension_semantics<parallel>], iteration_bounds = array<i64: 2>, scalar_prefetch = 0 : i64, scratch_operands = 0 : i64, tpu.core_type = #tpu.core_type<tc>, window_params = [{transform_indices = @transform_0, window_bounds = array<i64: 1, 128, 32>}, {transform_indices = @transform_1, window_bounds = array<i64: 1, 128, 128>}, {pipeline_mode = #tpu.pipeline_mode<synchronous>, transform_indices = @transform_2, window_bounds = array<i64: 32, 32>}, {pipeline_mode = #tpu.pipeline_mode<synchronous>, transform_indices = @transform_3, window_bounds = array<i64: 1, 32>}, {pipeline_mode = #tpu.pipeline_mode<synchronous>, transform_indices = @transform_4, window_bounds = array<i64: 32, 32>}, {pipeline_mode = #tpu.pipeline_mode<synchronous>, transform_indices = @transform_5, window_bounds = array<i64: 1, 32>}, {pipeline_mode = #tpu.pipeline_mode<synchronous>, transform_indices = @transform_6, window_bounds = array<i64: 32, 64>}, {pipeline_mode = #tpu.pipeline_mode<synchronous>, transform_indices = @transform_7, window_bounds = array<i64: 1, 64>}, {pipeline_mode = #tpu.pipeline_mode<synchronous>, transform_indices = @transform_8, window_bounds = array<i64: 32, 64>}, {pipeline_mode = #tpu.pipeline_mode<synchronous>, transform_indices = @transform_9, window_bounds = array<i64: 1, 64>}, {pipeline_mode = #tpu.pipeline_mode<synchronous>, transform_indices = @transform_10, window_bounds = array<i64: 32, 32>}, {pipeline_mode = #tpu.pipeline_mode<synchronous>, transform_indices = @transform_11, window_bounds = array<i64: 1, 32>}, {pipeline_mode = #tpu.pipeline_mode<synchronous>, transform_indices = @transform_12, window_bounds = array<i64: 1, 96>}, {transform_indices = @transform_13, window_bounds = array<i64: 1, 128, 128>}]} {
    %c0 = arith.constant 0 : index
    %c0_0 = arith.constant 0 : index
    %c0_1 = arith.constant 0 : index
    %0 = vector.load %arg1[%c0, %c0_0, %c0_1] : memref<1x128x32xbf16, #tpu.memory_space<vmem>>, vector<1x128x32xbf16>
    %1 = vector.shape_cast %0 : vector<1x128x32xbf16> to vector<128x32xbf16>
    %c0_2 = arith.constant 0 : index
    %c0_3 = arith.constant 0 : index
    %c0_4 = arith.constant 0 : index
    %2 = vector.load %arg2[%c0_2, %c0_3, %c0_4] : memref<1x128x128xi8, #tpu.memory_space<vmem>>, vector<1x128x128xi8>
    %3 = vector.shape_cast %2 : vector<1x128x128xi8> to vector<128x128xi8>
    %4 = arith.sitofp %3 : vector<128x128xi8> to vector<128x128xf32>
    %5 = arith.truncf %4 : vector<128x128xf32> to vector<128x128xbf16>
    %c0_5 = arith.constant 0 : index
    %c0_6 = arith.constant 0 : index
    %6 = vector.load %arg3[%c0_5, %c0_6] : memref<32x32xbf16, #tpu.memory_space<vmem>>, vector<32x32xbf16>
    %cst = arith.constant dense<0.000000e+00> : vector<128x32xf32>
    %7 = tpu.matmul %1, %6, %cst {dimension_numbers = #tpu.dot_dimension_numbers<[1], [0], [0], [1], [0, 0, 1, 1], [], []>} : vector<128x32xbf16>, vector<32x32xbf16>, vector<128x32xf32> -> vector<128x32xf32>
    %c0_7 = arith.constant 0 : index
    %c0_8 = arith.constant 0 : index
    %8 = vector.load %arg4[%c0_7, %c0_8] : memref<1x32xf32, #tpu.memory_space<vmem>>, vector<1x32xf32>
    %9 = vector.broadcast %8 : vector<1x32xf32> to vector<128x32xf32>
    %10 = arith.addf %7, %9 : vector<128x32xf32>
    %11 = arith.truncf %10 : vector<128x32xf32> to vector<128x32xbf16>
    %c0_9 = arith.constant 0 : index
    %c0_10 = arith.constant 0 : index
    %12 = vector.load %arg5[%c0_9, %c0_10] : memref<32x32xbf16, #tpu.memory_space<vmem>>, vector<32x32xbf16>
    %cst_11 = arith.constant dense<0.000000e+00> : vector<128x32xf32>
    %13 = tpu.matmul %11, %12, %cst_11 {dimension_numbers = #tpu.dot_dimension_numbers<[1], [0], [0], [1], [0, 0, 1, 1], [], []>} : vector<128x32xbf16>, vector<32x32xbf16>, vector<128x32xf32> -> vector<128x32xf32>
    %14 = arith.truncf %13 : vector<128x32xf32> to vector<128x32xbf16>
    %cst_12 = arith.constant dense<0.000000e+00> : vector<128x32xf32>
    %15 = tpu.matmul %5, %14, %cst_12 {dimension_numbers = #tpu.dot_dimension_numbers<[1], [0], [0], [1], [0, 0, 1, 1], [], []>} : vector<128x128xbf16>, vector<128x32xbf16>, vector<128x32xf32> -> vector<128x32xf32>
    %c0_13 = arith.constant 0 : index
    %c0_14 = arith.constant 0 : index
    %16 = vector.load %arg6[%c0_13, %c0_14] : memref<1x32xf32, #tpu.memory_space<vmem>>, vector<1x32xf32>
    %17 = vector.broadcast %16 : vector<1x32xf32> to vector<128x32xf32>
    %18 = arith.addf %15, %17 : vector<128x32xf32>
    %cst_15 = arith.constant 0.000000e+00 : f32
    %19 = vector.broadcast %cst_15 : f32 to vector<128x32xf32>
    %20 = arith.maximumf %18, %19 : vector<128x32xf32>
    %21 = arith.truncf %20 : vector<128x32xf32> to vector<128x32xbf16>
    %c0_16 = arith.constant 0 : index
    %c0_17 = arith.constant 0 : index
    %22 = vector.load %arg7[%c0_16, %c0_17] : memref<32x64xbf16, #tpu.memory_space<vmem>>, vector<32x64xbf16>
    %cst_18 = arith.constant dense<0.000000e+00> : vector<128x64xf32>
    %23 = tpu.matmul %21, %22, %cst_18 {dimension_numbers = #tpu.dot_dimension_numbers<[1], [0], [0], [1], [0, 0, 1, 1], [], []>} : vector<128x32xbf16>, vector<32x64xbf16>, vector<128x64xf32> -> vector<128x64xf32>
    %24 = arith.truncf %23 : vector<128x64xf32> to vector<128x64xbf16>
    %cst_19 = arith.constant dense<0.000000e+00> : vector<128x64xf32>
    %25 = tpu.matmul %5, %24, %cst_19 {dimension_numbers = #tpu.dot_dimension_numbers<[1], [0], [0], [1], [0, 0, 1, 1], [], []>} : vector<128x128xbf16>, vector<128x64xbf16>, vector<128x64xf32> -> vector<128x64xf32>
    %c0_20 = arith.constant 0 : index
    %c0_21 = arith.constant 0 : index
    %26 = vector.load %arg8[%c0_20, %c0_21] : memref<1x64xf32, #tpu.memory_space<vmem>>, vector<1x64xf32>
    %27 = vector.broadcast %26 : vector<1x64xf32> to vector<128x64xf32>
    %28 = arith.addf %25, %27 : vector<128x64xf32>
    %cst_22 = arith.constant 0.000000e+00 : f32
    %29 = vector.broadcast %cst_22 : f32 to vector<128x64xf32>
    %30 = arith.maximumf %28, %29 : vector<128x64xf32>
    %31 = vector.extract_strided_slice %30 {offsets = [0, 0], sizes = [128, 32], strides = [1, 1]} : vector<128x64xf32> to vector<128x32xf32>
    %32 = arith.truncf %31 : vector<128x32xf32> to vector<128x32xbf16>
    %33 = vector.extract_strided_slice %30 {offsets = [0, 32], sizes = [128, 32], strides = [1, 1]} : vector<128x64xf32> to vector<128x32xf32>
    %c0_23 = arith.constant 0 : index
    %c0_24 = arith.constant 0 : index
    %34 = vector.load %arg9[%c0_23, %c0_24] : memref<32x64xbf16, #tpu.memory_space<vmem>>, vector<32x64xbf16>
    %cst_25 = arith.constant dense<0.000000e+00> : vector<128x64xf32>
    %35 = tpu.matmul %32, %34, %cst_25 {dimension_numbers = #tpu.dot_dimension_numbers<[1], [0], [0], [1], [0, 0, 1, 1], [], []>} : vector<128x32xbf16>, vector<32x64xbf16>, vector<128x64xf32> -> vector<128x64xf32>
    %36 = arith.truncf %35 : vector<128x64xf32> to vector<128x64xbf16>
    %cst_26 = arith.constant dense<0.000000e+00> : vector<128x64xf32>
    %37 = tpu.matmul %5, %36, %cst_26 {dimension_numbers = #tpu.dot_dimension_numbers<[1], [0], [0], [1], [0, 0, 1, 1], [], []>} : vector<128x128xbf16>, vector<128x64xbf16>, vector<128x64xf32> -> vector<128x64xf32>
    %c0_27 = arith.constant 0 : index
    %c0_28 = arith.constant 0 : index
    %38 = vector.load %arg10[%c0_27, %c0_28] : memref<1x64xf32, #tpu.memory_space<vmem>>, vector<1x64xf32>
    %39 = vector.broadcast %38 : vector<1x64xf32> to vector<128x64xf32>
    %40 = arith.addf %37, %39 : vector<128x64xf32>
    %cst_29 = arith.constant 0.000000e+00 : f32
    %41 = vector.broadcast %cst_29 : f32 to vector<128x64xf32>
    %42 = arith.maximumf %40, %41 : vector<128x64xf32>
    %43 = vector.extract_strided_slice %42 {offsets = [0, 0], sizes = [128, 32], strides = [1, 1]} : vector<128x64xf32> to vector<128x32xf32>
    %44 = arith.truncf %43 : vector<128x32xf32> to vector<128x32xbf16>
    %45 = vector.extract_strided_slice %42 {offsets = [0, 32], sizes = [128, 32], strides = [1, 1]} : vector<128x64xf32> to vector<128x32xf32>
    %c0_30 = arith.constant 0 : index
    %c0_31 = arith.constant 0 : index
    %46 = vector.load %arg11[%c0_30, %c0_31] : memref<32x32xbf16, #tpu.memory_space<vmem>>, vector<32x32xbf16>
    %cst_32 = arith.constant dense<0.000000e+00> : vector<128x32xf32>
    %47 = tpu.matmul %44, %46, %cst_32 {dimension_numbers = #tpu.dot_dimension_numbers<[1], [0], [0], [1], [0, 0, 1, 1], [], []>} : vector<128x32xbf16>, vector<32x32xbf16>, vector<128x32xf32> -> vector<128x32xf32>
    %48 = arith.truncf %47 : vector<128x32xf32> to vector<128x32xbf16>
    %cst_33 = arith.constant dense<0.000000e+00> : vector<128x32xf32>
    %49 = tpu.matmul %5, %48, %cst_33 {dimension_numbers = #tpu.dot_dimension_numbers<[1], [0], [0], [1], [0, 0, 1, 1], [], []>} : vector<128x128xbf16>, vector<128x32xbf16>, vector<128x32xf32> -> vector<128x32xf32>
    %c0_34 = arith.constant 0 : index
    %c0_35 = arith.constant 0 : index
    %50 = vector.load %arg12[%c0_34, %c0_35] : memref<1x32xf32, #tpu.memory_space<vmem>>, vector<1x32xf32>
    %51 = vector.broadcast %50 : vector<1x32xf32> to vector<128x32xf32>
    %52 = arith.addf %49, %51 : vector<128x32xf32>
    %cst_36 = arith.constant 0.000000e+00 : f32
    %53 = vector.broadcast %cst_36 : f32 to vector<128x32xf32>
    %54 = arith.maximumf %52, %53 : vector<128x32xf32>
    %55 = tpu.concatenate %33, %45, %54 in 1 : vector<128x32xf32>, vector<128x32xf32>, vector<128x32xf32> -> vector<128x96xf32>
    %c0_37 = arith.constant 0 : index
    %c0_38 = arith.constant 0 : index
    %56 = vector.load %arg13[%c0_37, %c0_38] : memref<1x96xf32, #tpu.memory_space<vmem>>, vector<1x96xf32>
    %57 = vector.broadcast %56 : vector<1x96xf32> to vector<128x96xf32>
    %58 = arith.mulf %55, %57 : vector<128x96xf32>
    %cst_39 = arith.constant dense<0.000000e+00> : vector<128xf32>
    %59 = vector.multi_reduction <add>, %58, %cst_39 [1] : vector<128x96xf32> to vector<128xf32>
    %60 = vector.shape_cast %59 : vector<128xf32> to vector<128x1xf32>
    %61 = arith.negf %60 : vector<128x1xf32>
    %62 = math.exp %61 : vector<128x1xf32>
    %cst_40 = arith.constant 1.000000e+00 : f32
    %63 = vector.broadcast %cst_40 : f32 to vector<128x1xf32>
    %64 = arith.addf %63, %62 : vector<128x1xf32>
    %65 = arith.divf %63, %64 : vector<128x1xf32>
    %66 = tpu.iota {dimensions = array<i32: 1>} : vector<128x32xi32>
    %c0_i32 = arith.constant 0 : i32
    %67 = vector.broadcast %c0_i32 : i32 to vector<128x32xi32>
    %68 = arith.cmpi eq, %66, %67 : vector<128x32xi32>
    %cst_41 = arith.constant 0.000000e+00 : f32
    %69 = vector.shape_cast %60 : vector<128x1xf32> to vector<128x1xf32>
    %70 = vector.broadcast %69 : vector<128x1xf32> to vector<128x32xf32>
    %71 = vector.broadcast %cst_41 : f32 to vector<128x32xf32>
    %72 = arith.select %68, %70, %71 : vector<128x32xi1>, vector<128x32xf32>
    %c1_i32 = arith.constant 1 : i32
    %73 = vector.broadcast %c1_i32 : i32 to vector<128x32xi32>
    %74 = arith.cmpi eq, %66, %73 : vector<128x32xi32>
    %cst_42 = arith.constant 0.000000e+00 : f32
    %75 = vector.shape_cast %65 : vector<128x1xf32> to vector<128x1xf32>
    %76 = vector.broadcast %75 : vector<128x1xf32> to vector<128x32xf32>
    %77 = vector.broadcast %cst_42 : f32 to vector<128x32xf32>
    %78 = arith.select %74, %76, %77 : vector<128x32xi1>, vector<128x32xf32>
    %79 = arith.addf %72, %78 : vector<128x32xf32>
    %80 = tpu.concatenate %55, %79 in 1 : vector<128x96xf32>, vector<128x32xf32> -> vector<128x128xf32>
    %c0_43 = arith.constant 0 : index
    %c0_44 = arith.constant 0 : index
    %c0_45 = arith.constant 0 : index
    %81 = vector.load %arg14[%c0_43, %c0_44, %c0_45] : memref<1x128x128xf32, #tpu.memory_space<vmem>>, vector<1x128x128xf32>
    %82 = vector.shape_cast %81 : vector<1x128x128xf32> to vector<128x128xf32>
    %83 = vector.shape_cast %80 : vector<128x128xf32> to vector<1x128x128xf32>
    tpu.vector_store %arg14[%c0_43, %c0_44, %c0_45], %83 {strides = array<i32>} : memref<1x128x128xf32, #tpu.memory_space<vmem>>, vector<1x128x128xf32>,
    return
  }
  func.func @transform_0(%arg0: i32) -> (i32, i32, i32) {
    %c0_i32 = arith.constant 0 : i32
    %c0_i32_0 = arith.constant 0 : i32
    %c0_i32_1 = arith.constant 0 : i32
    return %arg0, %c0_i32, %c0_i32_0 : i32, i32, i32
  }
  func.func @transform_1(%arg0: i32) -> (i32, i32, i32) {
    %c0_i32 = arith.constant 0 : i32
    %c0_i32_0 = arith.constant 0 : i32
    %c0_i32_1 = arith.constant 0 : i32
    return %arg0, %c0_i32, %c0_i32_0 : i32, i32, i32
  }
  func.func @transform_2(%arg0: i32) -> (i32, i32) {
    %c0_i32 = arith.constant 0 : i32
    %c0_i32_0 = arith.constant 0 : i32
    %c0_i32_1 = arith.constant 0 : i32
    return %c0_i32, %c0_i32_0 : i32, i32
  }
  func.func @transform_3(%arg0: i32) -> (i32, i32) {
    %c0_i32 = arith.constant 0 : i32
    %c0_i32_0 = arith.constant 0 : i32
    %c0_i32_1 = arith.constant 0 : i32
    return %c0_i32, %c0_i32_0 : i32, i32
  }
  func.func @transform_4(%arg0: i32) -> (i32, i32) {
    %c0_i32 = arith.constant 0 : i32
    %c0_i32_0 = arith.constant 0 : i32
    %c0_i32_1 = arith.constant 0 : i32
    return %c0_i32, %c0_i32_0 : i32, i32
  }
  func.func @transform_5(%arg0: i32) -> (i32, i32) {
    %c0_i32 = arith.constant 0 : i32
    %c0_i32_0 = arith.constant 0 : i32
    %c0_i32_1 = arith.constant 0 : i32
    return %c0_i32, %c0_i32_0 : i32, i32
  }
  func.func @transform_6(%arg0: i32) -> (i32, i32) {
    %c0_i32 = arith.constant 0 : i32
    %c0_i32_0 = arith.constant 0 : i32
    %c0_i32_1 = arith.constant 0 : i32
    return %c0_i32, %c0_i32_0 : i32, i32
  }
  func.func @transform_7(%arg0: i32) -> (i32, i32) {
    %c0_i32 = arith.constant 0 : i32
    %c0_i32_0 = arith.constant 0 : i32
    %c0_i32_1 = arith.constant 0 : i32
    return %c0_i32, %c0_i32_0 : i32, i32
  }
  func.func @transform_8(%arg0: i32) -> (i32, i32) {
    %c0_i32 = arith.constant 0 : i32
    %c0_i32_0 = arith.constant 0 : i32
    %c0_i32_1 = arith.constant 0 : i32
    return %c0_i32, %c0_i32_0 : i32, i32
  }
  func.func @transform_9(%arg0: i32) -> (i32, i32) {
    %c0_i32 = arith.constant 0 : i32
    %c0_i32_0 = arith.constant 0 : i32
    %c0_i32_1 = arith.constant 0 : i32
    return %c0_i32, %c0_i32_0 : i32, i32
  }
  func.func @transform_10(%arg0: i32) -> (i32, i32) {
    %c0_i32 = arith.constant 0 : i32
    %c0_i32_0 = arith.constant 0 : i32
    %c0_i32_1 = arith.constant 0 : i32
    return %c0_i32, %c0_i32_0 : i32, i32
  }
  func.func @transform_11(%arg0: i32) -> (i32, i32) {
    %c0_i32 = arith.constant 0 : i32
    %c0_i32_0 = arith.constant 0 : i32
    %c0_i32_1 = arith.constant 0 : i32
    return %c0_i32, %c0_i32_0 : i32, i32
  }
  func.func @transform_12(%arg0: i32) -> (i32, i32) {
    %c0_i32 = arith.constant 0 : i32
    %c0_i32_0 = arith.constant 0 : i32
    %c0_i32_1 = arith.constant 0 : i32
    return %c0_i32, %c0_i32_0 : i32, i32
  }
  func.func @transform_13(%arg0: i32) -> (i32, i32, i32) {
    %c0_i32 = arith.constant 0 : i32
    %c0_i32_0 = arith.constant 0 : i32
    %c0_i32_1 = arith.constant 0 : i32
    return %arg0, %c0_i32, %c0_i32_0 : i32, i32, i32
  }
}

</mosaic_0001>

<llo_original>
// kernel: gcn_net2_forward_batched.1
$region0: #{gcn_net2_forward_batched.1}
  #allocation0 [shape = 'u32[]', space=smem, size = 0x4, offset = 0x4, fixed_abs, tag = 'smem constant byte address 0x4 - core index']
  #allocation1 [shape = 'u32[72,128]{1,0:T(1,128)}', space=vmem, size = 0x9000, scoped, tag = 'internal scratch']
  %s0 = inlined_call_operand.vmem [shape: bf16[2,128,32], index: 0, kind: input, shape index: {}]
  %s1 = inlined_call_operand.vmem [shape: s8[2,128,128], index: 1, kind: input, shape index: {}]
  %s2 = inlined_call_operand.vmem [shape: bf16[32,32], index: 2, kind: input, shape index: {}]
  %s3 = inlined_call_operand.vmem [shape: f32[1,32], index: 3, kind: input, shape index: {}]
  %s4 = inlined_call_operand.vmem [shape: bf16[32,32], index: 4, kind: input, shape index: {}]
  %s5 = inlined_call_operand.vmem [shape: f32[1,32], index: 5, kind: input, shape index: {}]
  %s6 = inlined_call_operand.vmem [shape: bf16[32,64], index: 6, kind: input, shape index: {}]
  %s7 = inlined_call_operand.vmem [shape: f32[1,64], index: 7, kind: input, shape index: {}]
  %s8 = inlined_call_operand.vmem [shape: bf16[32,64], index: 8, kind: input, shape index: {}]
  %s9 = inlined_call_operand.vmem [shape: f32[1,64], index: 9, kind: input, shape index: {}]
  %s10 = inlined_call_operand.vmem [shape: bf16[32,32], index: 10, kind: input, shape index: {}]
  %s11 = inlined_call_operand.vmem [shape: f32[1,32], index: 11, kind: input, shape index: {}]
  %s12 = inlined_call_operand.vmem [shape: f32[1,96], index: 12, kind: input, shape index: {}]
  %s13 = inlined_call_operand.vmem [shape: f32[2,128,128], index: 13, kind: output, shape index: {}]
  %s14 = sld [smem:[#allocation0]]
  $region85: #{gcn_net2_forward_batched.1} parent=0
    _
  %s16 = ssub.s32 1, %s14
  %s17 = scalar_select 0, %s16, %s14
  loop: start=0, step=1, limit=4
  $region2: #{gcn_net2_forward_batched.1} parent=0 // loop_pre_header
    _
  $region3: #{gcn_net2_forward_batched.1} parent=0 // loop_header
    %s19 = sphi 0, %s23
    %p20 = scmp.ge.s32.totalorder %s19, 4
    %s29 = sphi 0, %s31
    %s32 = sphi 0, %s29
    %s33 = sphi 0, %s32
    %s49 = sphi 0, %s33
    %s55 = sphi 0, %s57
    %s58 = sphi 0, %s55
    %s59 = sphi 0, %s58
    %s75 = sphi 0, %s59
    %s79 = sphi 0, %s79
    %s81 = sphi 0, %s79
    %s82 = sphi 0, %s81
    %s96 = sphi 0, %s82
    %s100 = sphi 0, %s100
    %s102 = sphi 0, %s100
    %s103 = sphi 0, %s102
    %s117 = sphi 0, %s103
    %s121 = sphi 0, %s121
    %s123 = sphi 0, %s121
    %s124 = sphi 0, %s123
    %s138 = sphi 0, %s124
    %s142 = sphi 0, %s142
    %s144 = sphi 0, %s142
    %s145 = sphi 0, %s144
    %s159 = sphi 0, %s145
    %s163 = sphi 0, %s163
    %s165 = sphi 0, %s163
    %s166 = sphi 0, %s165
    %s180 = sphi 0, %s166
    %s184 = sphi 0, %s184
    %s186 = sphi 0, %s184
    %s187 = sphi 0, %s186
    %s201 = sphi 0, %s187
    %s205 = sphi 0, %s205
    %s207 = sphi 0, %s205
    %s208 = sphi 0, %s207
    %s222 = sphi 0, %s208
    %s226 = sphi 0, %s226
    %s228 = sphi 0, %s226
    %s229 = sphi 0, %s228
    %s243 = sphi 0, %s229
    %s247 = sphi 0, %s247
    %s249 = sphi 0, %s247
    %s250 = sphi 0, %s249
    %s264 = sphi 0, %s250
    %s268 = sphi 0, %s268
    %s270 = sphi 0, %s268
    %s271 = sphi 0, %s270
    %s285 = sphi 0, %s271
    %s289 = sphi 0, %s289
    %s291 = sphi 0, %s289
    %s292 = sphi 0, %s291
    %s306 = sphi 0, %s292
    %s312 = sphi 0, %s314
    %s315 = sphi 0, %s312
    %s316 = sphi 0, %s315
    %s332 = sphi 0, %s316
  $region4: #{gcn_net2_forward_batched.1} parent=0 // loop_header_branch
    %22 = sbr.rel (%p20) target = $region8
  $region5: #{gcn_net2_forward_batched.1} parent=0 // loop_body
    %s24 = ssub.s32 %s19, 1
    %s25 = ssub.s32 %s19, 2
    %s26 = sadd.s32 %s19, 1
    %s27 = ssub.s32 %s19, %s26
    %p28 = scmp.eq.s32.totalorder %s27, 0
    %s30 = sadd.s32 %s29, 1
    %s31 = scalar_select %p28, %s29, %s30
    %p34 = pneg %p28
    %p35 = scmp.eq.s32.totalorder %s19, 1
    %p36 = por %p34, %p35
    %p37 = scmp.ne.s32.totalorder %s29, %s32
    %p38 = scmp.eq.s32.totalorder %s19, 0
    %p39 = por %p37, %p38
    %p40 = scmp.ne.s32.totalorder %s29, %s32
    %p41 = scmp.eq.s32.totalorder %s24, 1
    %p42 = por %p40, %p41
    %p43 = scmp.ne.s32.totalorder %s32, %s33
    %p44 = scmp.eq.s32.totalorder %s24, 0
    %p45 = por %p43, %p44
    %p46 = scmp.ne.s32.totalorder %s32, %s33
    %p47 = scmp.eq.s32.totalorder %s25, 1
    %p48 = por %p46, %p47
    %p50 = scmp.ne.s32.totalorder %s33, %s49
    %p51 = scmp.eq.s32.totalorder %s25, 0
    %p52 = por %p50, %p51
    %s53 = ssub.s32 %s19, %s26
    %p54 = scmp.eq.s32.totalorder %s53, 0
    %s56 = sadd.s32 %s55, 1
    %s57 = scalar_select %p54, %s55, %s56
    %p60 = pneg %p54
    %p61 = scmp.eq.s32.totalorder %s19, 1
    %p62 = por %p60, %p61
    %p63 = scmp.ne.s32.totalorder %s55, %s58
    %p64 = scmp.eq.s32.totalorder %s19, 0
    %p65 = por %p63, %p64
    %p66 = scmp.ne.s32.totalorder %s55, %s58
    %p67 = scmp.eq.s32.totalorder %s24, 1
    %p68 = por %p66, %p67
    %p69 = scmp.ne.s32.totalorder %s58, %s59
    %p70 = scmp.eq.s32.totalorder %s24, 0
    %p71 = por %p69, %p70
    %p72 = scmp.ne.s32.totalorder %s58, %s59
    %p73 = scmp.eq.s32.totalorder %s25, 1
    %p74 = por %p72, %p73
    %p76 = scmp.ne.s32.totalorder %s59, %s75
    %p77 = scmp.eq.s32.totalorder %s25, 0
    %p78 = por %p76, %p77
    %s80 = sadd.s32 %s79, 1
    %p83 = scmp.eq.s32.totalorder %s19, 1
    %p84 = scmp.ne.s32.totalorder %s79, %s81
    %p85 = scmp.eq.s32.totalorder %s19, 0
    %p86 = por %p84, %p85
    %p87 = scmp.ne.s32.totalorder %s79, %s81
    %p88 = scmp.eq.s32.totalorder %s24, 1
    %p89 = por %p87, %p88
    %p90 = scmp.ne.s32.totalorder %s81, %s82
    %p91 = scmp.eq.s32.totalorder %s24, 0
    %p92 = por %p90, %p91
    %p93 = scmp.ne.s32.totalorder %s81, %s82
    %p94 = scmp.eq.s32.totalorder %s25, 1
    %p95 = por %p93, %p94
    %p97 = scmp.ne.s32.totalorder %s82, %s96
    %p98 = scmp.eq.s32.totalorder %s25, 0
    %p99 = por %p97, %p98
    %s101 = sadd.s32 %s100, 1
    %p104 = scmp.eq.s32.totalorder %s19, 1
    %p105 = scmp.ne.s32.totalorder %s100, %s102
    %p106 = scmp.eq.s32.totalorder %s19, 0
    %p107 = por %p105, %p106
    %p108 = scmp.ne.s32.totalorder %s100, %s102
    %p109 = scmp.eq.s32.totalorder %s24, 1
    %p110 = por %p108, %p109
    %p111 = scmp.ne.s32.totalorder %s102, %s103
    %p112 = scmp.eq.s32.totalorder %s24, 0
    %p113 = por %p111, %p112
    %p114 = scmp.ne.s32.totalorder %s102, %s103
    %p115 = scmp.eq.s32.totalorder %s25, 1
    %p116 = por %p114, %p115
    %p118 = scmp.ne.s32.totalorder %s103, %s117
    %p119 = scmp.eq.s32.totalorder %s25, 0
    %p120 = por %p118, %p119
    %s122 = sadd.s32 %s121, 1
    %p125 = scmp.eq.s32.totalorder %s19, 1
    %p126 = scmp.ne.s32.totalorder %s121, %s123
    %p127 = scmp.eq.s32.totalorder %s19, 0
    %p128 = por %p126, %p127
    %p129 = scmp.ne.s32.totalorder %s121, %s123
    %p130 = scmp.eq.s32.totalorder %s24, 1
    %p131 = por %p129, %p130
    %p132 = scmp.ne.s32.totalorder %s123, %s124
    %p133 = scmp.eq.s32.totalorder %s24, 0
    %p134 = por %p132, %p133
    %p135 = scmp.ne.s32.totalorder %s123, %s124
    %p136 = scmp.eq.s32.totalorder %s25, 1
    %p137 = por %p135, %p136
    %p139 = scmp.ne.s32.totalorder %s124, %s138
    %p140 = scmp.eq.s32.totalorder %s25, 0
    %p141 = por %p139, %p140
    %s143 = sadd.s32 %s142, 1
    %p146 = scmp.eq.s32.totalorder %s19, 1
    %p147 = scmp.ne.s32.totalorder %s142, %s144
    %p148 = scmp.eq.s32.totalorder %s19, 0
    %p149 = por %p147, %p148
    %p150 = scmp.ne.s32.totalorder %s142, %s144
    %p151 = scmp.eq.s32.totalorder %s24, 1
    %p152 = por %p150, %p151
    %p153 = scmp.ne.s32.totalorder %s144, %s145
    %p154 = scmp.eq.s32.totalorder %s24, 0
    %p155 = por %p153, %p154
    %p156 = scmp.ne.s32.totalorder %s144, %s145
    %p157 = scmp.eq.s32.totalorder %s25, 1
    %p158 = por %p156, %p157
    %p160 = scmp.ne.s32.totalorder %s145, %s159
    %p161 = scmp.eq.s32.totalorder %s25, 0
    %p162 = por %p160, %p161
    %s164 = sadd.s32 %s163, 1
    %p167 = scmp.eq.s32.totalorder %s19, 1
    %p168 = scmp.ne.s32.totalorder %s163, %s165
    %p169 = scmp.eq.s32.totalorder %s19, 0
    %p170 = por %p168, %p169
    %p171 = scmp.ne.s32.totalorder %s163, %s165
    %p172 = scmp.eq.s32.totalorder %s24, 1
    %p173 = por %p171, %p172
    %p174 = scmp.ne.s32.totalorder %s165, %s166
    %p175 = scmp.eq.s32.totalorder %s24, 0
    %p176 = por %p174, %p175
    %p177 = scmp.ne.s32.totalorder %s165, %s166
    %p178 = scmp.eq.s32.totalorder %s25, 1
    %p179 = por %p177, %p178
    %p181 = scmp.ne.s32.totalorder %s166, %s180
    %p182 = scmp.eq.s32.totalorder %s25, 0
    %p183 = por %p181, %p182
    %s185 = sadd.s32 %s184, 1
    %p188 = scmp.eq.s32.totalorder %s19, 1
    %p189 = scmp.ne.s32.totalorder %s184, %s186
    %p190 = scmp.eq.s32.totalorder %s19, 0
    %p191 = por %p189, %p190
    %p192 = scmp.ne.s32.totalorder %s184, %s186
    %p193 = scmp.eq.s32.totalorder %s24, 1
    %p194 = por %p192, %p193
    %p195 = scmp.ne.s32.totalorder %s186, %s187
    %p196 = scmp.eq.s32.totalorder %s24, 0
    %p197 = por %p195, %p196
    %p198 = scmp.ne.s32.totalorder %s186, %s187
    %p199 = scmp.eq.s32.totalorder %s25, 1
    %p200 = por %p198, %p199
    %p202 = scmp.ne.s32.totalorder %s187, %s201
    %p203 = scmp.eq.s32.totalorder %s25, 0
    %p204 = por %p202, %p203
    %s206 = sadd.s32 %s205, 1
    %p209 = scmp.eq.s32.totalorder %s19, 1
    %p210 = scmp.ne.s32.totalorder %s205, %s207
    %p211 = scmp.eq.s32.totalorder %s19, 0
    %p212 = por %p210, %p211
    %p213 = scmp.ne.s32.totalorder %s205, %s207
    %p214 = scmp.eq.s32.totalorder %s24, 1
    %p215 = por %p213, %p214
    %p216 = scmp.ne.s32.totalorder %s207, %s208
    %p217 = scmp.eq.s32.totalorder %s24, 0
    %p218 = por %p216, %p217
    %p219 = scmp.ne.s32.totalorder %s207, %s208
    %p220 = scmp.eq.s32.totalorder %s25, 1
    %p221 = por %p219, %p220
    %p223 = scmp.ne.s32.totalorder %s208, %s222
    %p224 = scmp.eq.s32.totalorder %s25, 0
    %p225 = por %p223, %p224
    %s227 = sadd.s32 %s226, 1
    %p230 = scmp.eq.s32.totalorder %s19, 1
    %p231 = scmp.ne.s32.totalorder %s226, %s228
    %p232 = scmp.eq.s32.totalorder %s19, 0
    %p233 = por %p231, %p232
    %p234 = scmp.ne.s32.totalorder %s226, %s228
    %p235 = scmp.eq.s32.totalorder %s24, 1
    %p236 = por %p234, %p235
    %p237 = scmp.ne.s32.totalorder %s228, %s229
    %p238 = scmp.eq.s32.totalorder %s24, 0
    %p239 = por %p237, %p238
    %p240 = scmp.ne.s32.totalorder %s228, %s229
    %p241 = scmp.eq.s32.totalorder %s25, 1
    %p242 = por %p240, %p241
    %p244 = scmp.ne.s32.totalorder %s229, %s243
    %p245 = scmp.eq.s32.totalorder %s25, 0
    %p246 = por %p244, %p245
    %s248 = sadd.s32 %s247, 1
    %p251 = scmp.eq.s32.totalorder %s19, 1
    %p252 = scmp.ne.s32.totalorder %s247, %s249
    %p253 = scmp.eq.s32.totalorder %s19, 0
    %p254 = por %p252, %p253
    %p255 = scmp.ne.s32.totalorder %s247, %s249
    %p256 = scmp.eq.s32.totalorder %s24, 1
    %p257 = por %p255, %p256
    %p258 = scmp.ne.s32.totalorder %s249, %s250
    %p259 = scmp.eq.s32.totalorder %s24, 0
    %p260 = por %p258, %p259
    %p261 = scmp.ne.s32.totalorder %s249, %s250
    %p262 = scmp.eq.s32.totalorder %s25, 1
    %p263 = por %p261, %p262
    %p265 = scmp.ne.s32.totalorder %s250, %s264
    %p266 = scmp.eq.s32.totalorder %s25, 0
    %p267 = por %p265, %p266
    %s269 = sadd.s32 %s268, 1
    %p272 = scmp.eq.s32.totalorder %s19, 1
    %p273 = scmp.ne.s32.totalorder %s268, %s270
    %p274 = scmp.eq.s32.totalorder %s19, 0
    %p275 = por %p273, %p274
    %p276 = scmp.ne.s32.totalorder %s268, %s270
    %p277 = scmp.eq.s32.totalorder %s24, 1
    %p278 = por %p276, %p277
    %p279 = scmp.ne.s32.totalorder %s270, %s271
    %p280 = scmp.eq.s32.totalorder %s24, 0
    %p281 = por %p279, %p280
    %p282 = scmp.ne.s32.totalorder %s270, %s271
    %p283 = scmp.eq.s32.totalorder %s25, 1
    %p284 = por %p282, %p283
    %p286 = scmp.ne.s32.totalorder %s271, %s285
    %p287 = scmp.eq.s32.totalorder %s25, 0
    %p288 = por %p286, %p287
    %s290 = sadd.s32 %s289, 1
    %p293 = scmp.eq.s32.totalorder %s19, 1
    %p294 = scmp.ne.s32.totalorder %s289, %s291
    %p295 = scmp.eq.s32.totalorder %s19, 0
    %p296 = por %p294, %p295
    %p297 = scmp.ne.s32.totalorder %s289, %s291
    %p298 = scmp.eq.s32.totalorder %s24, 1
    %p299 = por %p297, %p298
    %p300 = scmp.ne.s32.totalorder %s291, %s292
    %p301 = scmp.eq.s32.totalorder %s24, 0
    %p302 = por %p300, %p301
    %p303 = scmp.ne.s32.totalorder %s291, %s292
    %p304 = scmp.eq.s32.totalorder %s25, 1
    %p305 = por %p303, %p304
    %p307 = scmp.ne.s32.totalorder %s292, %s306
    %p308 = scmp.eq.s32.totalorder %s25, 0
    %p309 = por %p307, %p308
    %s310 = ssub.s32 %s19, %s26
    %p311 = scmp.eq.s32.totalorder %s310, 0
    %s313 = sadd.s32 %s312, 1
    %s314 = scalar_select %p311, %s312, %s313
    %p317 = pneg %p311
    %p318 = scmp.eq.s32.totalorder %s19, 1
    %p319 = por %p317, %p318
    %p320 = scmp.ne.s32.totalorder %s312, %s315
    %p321 = scmp.eq.s32.totalorder %s19, 0
    %p322 = por %p320, %p321
    %p323 = scmp.ne.s32.totalorder %s312, %s315
    %p324 = scmp.eq.s32.totalorder %s24, 1
    %p325 = por %p323, %p324
    %p326 = scmp.ne.s32.totalorder %s315, %s316
    %p327 = scmp.eq.s32.totalorder %s24, 0
    %p328 = por %p326, %p327
    %p329 = scmp.ne.s32.totalorder %s315, %s316
    %p330 = scmp.eq.s32.totalorder %s25, 1
    %p331 = por %p329, %p330
    %p333 = scmp.ne.s32.totalorder %s316, %s332
    %p334 = scmp.eq.s32.totalorder %s25, 0
    %p335 = por %p333, %p334
    %p336 = scmp.le.s32.totalorder 1, %s19
    %p337 = scmp.lt.s32.totalorder %s19, 3
    %p338 = pnand %p336, %p337
    %p339 = pneg %p338
    // Predicated region
    $region9: #{gcn_net2_forward_batched.1} parent=5 // pred_check
      _
    $region10: #{gcn_net2_forward_batched.1} parent=5 // pred_check_branch
      %341 = sbr.rel (%p338) target = $region12
    $region11: #{gcn_net2_forward_batched.1} parent=5 // pred_region
      %s342 = ssub.s32 %s19, 1
      // Predicated region
      $region13: #{gcn_net2_forward_batched.1} parent=11 // pred_check
        %p343 = pneg %p92
      $region14: #{gcn_net2_forward_batched.1} parent=11 // pred_check_branch
        %345 = sbr.rel (%p343) target = $region16
      $region15: #{gcn_net2_forward_batched.1} parent=11 // pred_region
        _
      $region16: #{gcn_net2_forward_batched.1} parent=11 // pred_fallthru
        _
      // Predicated region
      $region17: #{gcn_net2_forward_batched.1} parent=11 // pred_check
        %p346 = pneg %p113
      $region18: #{gcn_net2_forward_batched.1} parent=11 // pred_check_branch
        %348 = sbr.rel (%p346) target = $region20
      $region19: #{gcn_net2_forward_batched.1} parent=11 // pred_region
        _
      $region20: #{gcn_net2_forward_batched.1} parent=11 // pred_fallthru
        _
      // Predicated region
      $region21: #{gcn_net2_forward_batched.1} parent=11 // pred_check
        %p349 = pneg %p134
      $region22: #{gcn_net2_forward_batched.1} parent=11 // pred_check_branch
        %351 = sbr.rel (%p349) target = $region24
      $region23: #{gcn_net2_forward_batched.1} parent=11 // pred_region
        _
      $region24: #{gcn_net2_forward_batched.1} parent=11 // pred_fallthru
        _
      // Predicated region
      $region25: #{gcn_net2_forward_batched.1} parent=11 // pred_check
        %p352 = pneg %p155
      $region26: #{gcn_net2_forward_batched.1} parent=11 // pred_check_branch
        %354 = sbr.rel (%p352) target = $region28
      $region27: #{gcn_net2_forward_batched.1} parent=11 // pred_region
        _
      $region28: #{gcn_net2_forward_batched.1} parent=11 // pred_fallthru
        _
      // Predicated region
      $region29: #{gcn_net2_forward_batched.1} parent=11 // pred_check
        %p355 = pneg %p176
      $region30: #{gcn_net2_forward_batched.1} parent=11 // pred_check_branch
        %357 = sbr.rel (%p355) target = $region32
      $region31: #{gcn_net2_forward_batched.1} parent=11 // pred_region
        _
      $region32: #{gcn_net2_forward_batched.1} parent=11 // pred_fallthru
        _
      // Predicated region
      $region33: #{gcn_net2_forward_batched.1} parent=11 // pred_check
        %p358 = pneg %p197
      $region34: #{gcn_net2_forward_batched.1} parent=11 // pred_check_branch
        %360 = sbr.rel (%p358) target = $region36
      $region35: #{gcn_net2_forward_batched.1} parent=11 // pred_region
        _
      $region36: #{gcn_net2_forward_batched.1} parent=11 // pred_fallthru
        _
      // Predicated region
      $region37: #{gcn_net2_forward_batched.1} parent=11 // pred_check
        %p361 = pneg %p218
      $region38: #{gcn_net2_forward_batched.1} parent=11 // pred_check_branch
        %363 = sbr.rel (%p361) target = $region40
      $region39: #{gcn_net2_forward_batched.1} parent=11 // pred_region
        _
      $region40: #{gcn_net2_forward_batched.1} parent=11 // pred_fallthru
        _
      // Predicated region
      $region41: #{gcn_net2_forward_batched.1} parent=11 // pred_check
        %p364 = pneg %p239
      $region42: #{gcn_net2_forward_batched.1} parent=11 // pred_check_branch
        %366 = sbr.rel (%p364) target = $region44
      $region43: #{gcn_net2_forward_batched.1} parent=11 // pred_region
        _
      $region44: #{gcn_net2_forward_batched.1} parent=11 // pred_fallthru
        _
      // Predicated region
      $region45: #{gcn_net2_forward_batched.1} parent=11 // pred_check
        %p367 = pneg %p260
      $region46: #{gcn_net2_forward_batched.1} parent=11 // pred_check_branch
        %369 = sbr.rel (%p367) target = $region48
      $region47: #{gcn_net2_forward_batched.1} parent=11 // pred_region
        _
      $region48: #{gcn_net2_forward_batched.1} parent=11 // pred_fallthru
        _
      // Predicated region
      $region49: #{gcn_net2_forward_batched.1} parent=11 // pred_check
        %p370 = pneg %p281
      $region50: #{gcn_net2_forward_batched.1} parent=11 // pred_check_branch
        %372 = sbr.rel (%p370) target = $region52
      $region51: #{gcn_net2_forward_batched.1} parent=11 // pred_region
        _
      $region52: #{gcn_net2_forward_batched.1} parent=11 // pred_fallthru
        _
      // Predicated region
      $region53: #{gcn_net2_forward_batched.1} parent=11 // pred_check
        %p373 = pneg %p302
      $region54: #{gcn_net2_forward_batched.1} parent=11 // pred_check_branch
        %375 = sbr.rel (%p373) target = $region56
      $region55: #{gcn_net2_forward_batched.1} parent=11 // pred_region
        _
      $region56: #{gcn_net2_forward_batched.1} parent=11 // pred_fallthru
        _
    $region12: #{gcn_net2_forward_batched.1} parent=5 // pred_fallthru
      _
    %p376 = scmp.lt.s32.totalorder %s19, 2
    // Predicated region
    $region57: #{gcn_net2_forward_batched.1} parent=5 // pred_check
      %p377 = pneg %p376
    $region58: #{gcn_net2_forward_batched.1} parent=5 // pred_check_branch
      %379 = sbr.rel (%p377) target = $region60
    $region59: #{gcn_net2_forward_batched.1} parent=5 // pred_region
      // Predicated region
      $region61: #{gcn_net2_forward_batched.1} parent=59 // pred_check
        %p380 = pneg %p39
      $region62: #{gcn_net2_forward_batched.1} parent=59 // pred_check_branch
        %382 = sbr.rel (%p380) target = $region64
      $region63: #{gcn_net2_forward_batched.1} parent=59 // pred_region
        %p383 = scmp.lt.s32.totalorder %s19, 1
        %s384 = scalar_select %p383, %s19, 1
        %s385 = smul.addr %s384, 16
        %s386 = smul.addr %s385, 4
        %s387 = scalar_lea.vmem %s0, %s386
      $region64: #{gcn_net2_forward_batched.1} parent=59 // pred_fallthru
        _
      // Predicated region
      $region65: #{gcn_net2_forward_batched.1} parent=59 // pred_check
        %p388 = pneg %p65
      $region66: #{gcn_net2_forward_batched.1} parent=59 // pred_check_branch
        %390 = sbr.rel (%p388) target = $region68
      $region67: #{gcn_net2_forward_batched.1} parent=59 // pred_region
        %p391 = scmp.lt.s32.totalorder %s19, 1
        %s392 = scalar_select %p391, %s19, 1
        %s393 = smul.addr %s392, 4
        %s394 = smul.addr %s393, 8
        %s395 = scalar_lea.vmem %s1, %s394
      $region68: #{gcn_net2_forward_batched.1} parent=59 // pred_fallthru
        _
    $region60: #{gcn_net2_forward_batched.1} parent=5 // pred_fallthru
      _
    %p396 = scmp.le.s32.totalorder 1, %s19
    %p397 = scmp.lt.s32.totalorder %s19, 3
    %p398 = pnand %p396, %p397
    %p399 = pneg %p398
    // Predicated region
    $region69: #{gcn_net2_forward_batched.1} parent=5 // pred_check
      _
    $region70: #{gcn_net2_forward_batched.1} parent=5 // pred_check_branch
      %401 = sbr.rel (%p398) target = $region72
    $region71: #{gcn_net2_forward_batched.1} parent=5 // pred_region
      %s402 = ssub.s32 %s19, 1
      %p403 = scmp.lt.s32.totalorder %s24, 1
      %s404 = scalar_select %p403, %s24, 1
      %s405 = smul.addr %s404, 16
      %s406 = smul.addr %s405, 4
      %s407 = scalar_lea.vmem %s0, %s406
      %p408 = pneg %p45
      %p409 = pneg %p42
      %p410 = scmp.lt.s32.totalorder %s24, 1
      %s411 = scalar_select %p410, %s24, 1
      %s412 = smul.addr %s411, 4
      %s413 = smul.addr %s412, 8
      %s414 = scalar_lea.vmem %s1, %s413
      %p415 = pneg %p71
      %p416 = pneg %p68
      %p417 = pneg %p92
      %p418 = pneg %p89
      %p419 = pneg %p113
      %p420 = pneg %p110
      %p421 = pneg %p134
      %p422 = pneg %p131
      %p423 = pneg %p155
      %p424 = pneg %p152
      %p425 = pneg %p176
      %p426 = pneg %p173
      %p427 = pneg %p197
      %p428 = pneg %p194
      %p429 = pneg %p218
      %p430 = pneg %p215
      %p431 = pneg %p239
      %p432 = pneg %p236
      %p433 = pneg %p260
      %p434 = pneg %p257
      %p435 = pneg %p281
      %p436 = pneg %p278
      %p437 = pneg %p302
      %p438 = pneg %p299
      %p439 = pneg %p328
      %p440 = pneg %p325
      %p441 = scmp.lt.s32.totalorder %s24, 1
      %s442 = scalar_select %p441, %s24, 1
      %s443 = smul.addr %s442, 16
      %s444 = smul.addr %s443, 8
      %s445 = scalar_lea.vmem %s13, %s444
      %p446 = scmp.lt.s32.totalorder %s24, 1
      %s447 = scalar_select %p446, %s24, 1
      %s448 = smul.addr %s447, 16
      %s449 = smul.addr %s448, 4
      %s450 = scalar_lea.vmem %s0, %s449
      %p451 = scmp.lt.s32.totalorder %s24, 1
      %s452 = scalar_select %p451, %s24, 1
      %s453 = smul.addr %s452, 4
      %s454 = smul.addr %s453, 8
      %s455 = scalar_lea.vmem %s1, %s454
      %p456 = scmp.lt.s32.totalorder %s24, 1
      %s457 = scalar_select %p456, %s24, 1
      %s458 = smul.addr %s457, 16
      %s459 = smul.addr %s458, 8
      %s460 = scalar_lea.vmem %s13, %s459
      %v462 = vld [vmem:[%s450] sm:$0xf]
      %v463 = vld [vmem:[%s450 + $0x4] sm:$0xf]
      %v464 = vld [vmem:[%s450 + $0x8] sm:$0xf]
      %v465 = vld [vmem:[%s450 + $0xc] sm:$0xf]
      %v466 = vld [vmem:[%s450 + $0x10] sm:$0xf]
      %v467 = vld [vmem:[%s450 + $0x14] sm:$0xf]
      %v468 = vld [vmem:[%s450 + $0x18] sm:$0xf]
      %v469 = vld [vmem:[%s450 + $0x1c] sm:$0xf]
      %v470 = vld [vmem:[%s450 + $0x20] sm:$0xf]
      %v471 = vld [vmem:[%s450 + $0x24] sm:$0xf]
      %v472 = vld [vmem:[%s450 + $0x28] sm:$0xf]
      %v473 = vld [vmem:[%s450 + $0x2c] sm:$0xf]
      %v474 = vld [vmem:[%s450 + $0x30] sm:$0xf]
      %v475 = vld [vmem:[%s450 + $0x34] sm:$0xf]
      %v476 = vld [vmem:[%s450 + $0x38] sm:$0xf]
      %v477 = vld [vmem:[%s450 + $0x3c] sm:$0xf]
      %v478 = vld [vmem:[%s455] sm:$0xff]
      %v479 = vld [vmem:[%s455 + $0x8] sm:$0xff]
      %v480 = vld [vmem:[%s455 + $0x10] sm:$0xff]
      %v481 = vld [vmem:[%s455 + $0x18] sm:$0xff]
      %v482 = vunpack.c.0.s8 %v478
      %v483 = vunpack.c.1.s8 %v478
      %v484 = vunpack.c.2.s8 %v478
      %v485 = vunpack.c.3.s8 %v478
      %v486 = vunpack.c.0.s8 %v479
      %v487 = vunpack.c.1.s8 %v479
      %v488 = vunpack.c.2.s8 %v479
      %v489 = vunpack.c.3.s8 %v479
      %v490 = vunpack.c.0.s8 %v480
      %v491 = vunpack.c.1.s8 %v480
      %v492 = vunpack.c.2.s8 %v480
      %v493 = vunpack.c.3.s8 %v480
      %v494 = vunpack.c.0.s8 %v481
      %v495 = vunpack.c.1.s8 %v481
      %v496 = vunpack.c.2.s8 %v481
      %v497 = vunpack.c.3.s8 %v481
      %v498 = vcvt.s32.f32 %v482
      %v499 = vcvt.s32.f32 %v483
      %v500 = vcvt.s32.f32 %v484
      %v501 = vcvt.s32.f32 %v485
      %v502 = vcvt.s32.f32 %v486
      %v503 = vcvt.s32.f32 %v487
      %v504 = vcvt.s32.f32 %v488
      %v505 = vcvt.s32.f32 %v489
      %v506 = vcvt.s32.f32 %v490
      %v507 = vcvt.s32.f32 %v491
      %v508 = vcvt.s32.f32 %v492
      %v509 = vcvt.s32.f32 %v493
      %v510 = vcvt.s32.f32 %v494
      %v511 = vcvt.s32.f32 %v495
      %v512 = vcvt.s32.f32 %v496
      %v513 = vcvt.s32.f32 %v497
      %v514 = vpack.c.bf16 %v499, %v498
      %v515 = vpack.c.bf16 %v501, %v500
      %v516 = vpack.c.bf16 %v503, %v502
      %v517 = vpack.c.bf16 %v505, %v504
      %v518 = vpack.c.bf16 %v507, %v506
      %v519 = vpack.c.bf16 %v509, %v508
      %v520 = vpack.c.bf16 %v511, %v510
      %v521 = vpack.c.bf16 %v513, %v512
      %v522 = vld [vmem:[%s2] sm:$0xf]
      %v523 = vld [vmem:[%s2 + $0x4] sm:$0xf]
      %v524 = vld [vmem:[%s2 + $0x8] sm:$0xf]
      %v525 = vld [vmem:[%s2 + $0xc] sm:$0xf]
      %v526 = vld [vmem:[%s3] sm:$0x1]
      %v528 = vperm.slane %v526, 0
      %v546 = vunpack.c.l.b16 %v462
      %v547 = vunpack.c.l.b16 %v463
      %v548 = vunpack.c.l.b16 %v464
      %v549 = vunpack.c.l.b16 %v465
      %v550 = vunpack.c.l.b16 %v466
      %v551 = vunpack.c.l.b16 %v467
      %v552 = vunpack.c.l.b16 %v468
      %v553 = vunpack.c.l.b16 %v469
      %v554 = vunpack.c.l.b16 %v470
      %v555 = vunpack.c.l.b16 %v471
      %v556 = vunpack.c.l.b16 %v472
      %v557 = vunpack.c.l.b16 %v473
      %v558 = vunpack.c.l.b16 %v474
      %v559 = vunpack.c.l.b16 %v475
      %v560 = vunpack.c.l.b16 %v476
      %v561 = vunpack.c.l.b16 %v477
      %v562 = vpack.c.b16 %v547, %v546
      %v563 = vpack.c.b16 %v549, %v548
      %v564 = vpack.c.b16 %v551, %v550
      %v565 = vpack.c.b16 %v553, %v552
      %v566 = vpack.c.b16 %v555, %v554
      %v567 = vpack.c.b16 %v557, %v556
      %v568 = vpack.c.b16 %v559, %v558
      %v569 = vpack.c.b16 %v561, %v560
      %v574 = vunpack.c.l.b16 %v522
      %v575 = vunpack.c.l.b16 %v523
      %v576 = vunpack.c.l.b16 %v524
      %v577 = vunpack.c.l.b16 %v525
      %v578 = vpack.c.b16 %v575, %v574
      %v579 = vpack.c.b16 %v577, %v576
      %vm582 = vcmask 261120
      %v584 = vsel %vm582, %v562, 0
      %v587 = vsel %vm582, %v563, 0
      %v590 = vsel %vm582, %v564, 0
      %v593 = vsel %vm582, %v565, 0
      %v596 = vsel %vm582, %v566, 0
      %v599 = vsel %vm582, %v567, 0
      %v602 = vsel %vm582, %v568, 0
      %v605 = vsel %vm582, %v569, 0
      %607 = vmatpush.bf16.msra.mxu0 0
      %608 = vmatpush.bf16.msra.mxu0 0
      %609 = vmatpush.bf16.msra.mxu0 0
      %610 = vmatpush.bf16.msra.mxu0 0
      %611 = vmatpush.bf16.msra.mxu0 0
      %612 = vmatpush.bf16.msra.mxu0 0
      %613 = vmatpush.bf16.msra.mxu0 %v579
      %614 = vmatpush.bf16.msra.mxu0 %v578
      %615 = vmatmul.bf16.gmra.mxu0 %v584
      %v616 = vpop.f32.mrf.mxu0
      %v617 = vadd.f32 %v528, %v616
      %v618 = vpop.f32.mrf.mxu0
      %v619 = vadd.f32 %v528, %v618
      %620 = vmatmul.bf16.gmra.mxu0 %v587
      %v621 = vpop.f32.mrf.mxu0
      %v622 = vadd.f32 %v528, %v621
      %v623 = vpop.f32.mrf.mxu0
      %v624 = vadd.f32 %v528, %v623
      %625 = vmatmul.bf16.gmra.mxu0 %v590
      %v626 = vpop.f32.mrf.mxu0
      %v627 = vadd.f32 %v528, %v626
      %v628 = vpop.f32.mrf.mxu0
      %v629 = vadd.f32 %v528, %v628
      %630 = vmatmul.bf16.gmra.mxu0 %v593
      %v631 = vpop.f32.mrf.mxu0
      %v632 = vadd.f32 %v528, %v631
      %v633 = vpop.f32.mrf.mxu0
      %v634 = vadd.f32 %v528, %v633
      %635 = vmatmul.bf16.gmra.mxu0 %v596
      %v636 = vpop.f32.mrf.mxu0
      %v637 = vadd.f32 %v528, %v636
      %v638 = vpop.f32.mrf.mxu0
      %v639 = vadd.f32 %v528, %v638
      %640 = vmatmul.bf16.gmra.mxu0 %v599
      %v641 = vpop.f32.mrf.mxu0
      %v642 = vadd.f32 %v528, %v641
      %v643 = vpop.f32.mrf.mxu0
      %v644 = vadd.f32 %v528, %v643
      %645 = vmatmul.bf16.gmra.mxu0 %v602
      %v646 = vpop.f32.mrf.mxu0
      %v647 = vadd.f32 %v528, %v646
      %v648 = vpop.f32.mrf.mxu0
      %v649 = vadd.f32 %v528, %v648
      %650 = vmatmul.bf16.gmra.mxu0 %v605
      %v651 = vpop.f32.mrf.mxu0
      %v652 = vadd.f32 %v528, %v651
      %v653 = vpop.f32.mrf.mxu0
      %v654 = vadd.f32 %v528, %v653
      %655 = vdwg.mxu0
      %v656 = vpack.c.bf16 %v619, %v617
      %v657 = vpack.c.bf16 %v624, %v622
      %v658 = vpack.c.bf16 %v629, %v627
      %v659 = vpack.c.bf16 %v634, %v632
      %v660 = vpack.c.bf16 %v639, %v637
      %v661 = vpack.c.bf16 %v644, %v642
      %v662 = vpack.c.bf16 %v649, %v647
      %v663 = vpack.c.bf16 %v654, %v652
      %v664 = vld [vmem:[%s4] sm:$0xf]
      %v665 = vld [vmem:[%s4 + $0x4] sm:$0xf]
      %v666 = vld [vmem:[%s4 + $0x8] sm:$0xf]
      %v667 = vld [vmem:[%s4 + $0xc] sm:$0xf]
      %v672 = vunpack.c.l.b16 %v664
      %v673 = vunpack.c.l.b16 %v665
      %v674 = vunpack.c.l.b16 %v666
      %v675 = vunpack.c.l.b16 %v667
      %v676 = vpack.c.b16 %v673, %v672
      %v677 = vpack.c.b16 %v675, %v674
      %v681 = vsel %vm582, %v656, 0
      %v684 = vsel %vm582, %v657, 0
      %v687 = vsel %vm582, %v658, 0
      %v690 = vsel %vm582, %v659, 0
      %v693 = vsel %vm582, %v660, 0
      %v696 = vsel %vm582, %v661, 0
      %v699 = vsel %vm582, %v662, 0
      %v702 = vsel %vm582, %v663, 0
      %704 = vmatpush.bf16.msra.mxu0 0
      %705 = vmatpush.bf16.msra.mxu0 0
      %706 = vmatpush.bf16.msra.mxu0 0
      %707 = vmatpush.bf16.msra.mxu0 0
      %708 = vmatpush.bf16.msra.mxu0 0
      %709 = vmatpush.bf16.msra.mxu0 0
      %710 = vmatpush.bf16.msra.mxu0 %v677
      %711 = vmatpush.bf16.msra.mxu0 %v676
      %712 = vmatmul.bf16.gmra.mxu0 %v681
      %v713 = vpop.f32.mrf.mxu0
      %v714 = vadd.f32 0.0, %v713
      %v715 = vpop.f32.mrf.mxu0
      %v716 = vadd.f32 0.0, %v715
      %717 = vmatmul.bf16.gmra.mxu0 %v684
      %v718 = vpop.f32.mrf.mxu0
      %v719 = vadd.f32 0.0, %v718
      %v720 = vpop.f32.mrf.mxu0
      %v721 = vadd.f32 0.0, %v720
      %722 = vmatmul.bf16.gmra.mxu0 %v687
      %v723 = vpop.f32.mrf.mxu0
      %v724 = vadd.f32 0.0, %v723
      %v725 = vpop.f32.mrf.mxu0
      %v726 = vadd.f32 0.0, %v725
      %727 = vmatmul.bf16.gmra.mxu0 %v690
      %v728 = vpop.f32.mrf.mxu0
      %v729 = vadd.f32 0.0, %v728
      %v730 = vpop.f32.mrf.mxu0
      %v731 = vadd.f32 0.0, %v730
      %732 = vmatmul.bf16.gmra.mxu0 %v693
      %v733 = vpop.f32.mrf.mxu0
      %v734 = vadd.f32 0.0, %v733
      %v735 = vpop.f32.mrf.mxu0
      %v736 = vadd.f32 0.0, %v735
      %737 = vmatmul.bf16.gmra.mxu0 %v696
      %v738 = vpop.f32.mrf.mxu0
      %v739 = vadd.f32 0.0, %v738
      %v740 = vpop.f32.mrf.mxu0
      %v741 = vadd.f32 0.0, %v740
      %742 = vmatmul.bf16.gmra.mxu0 %v699
      %v743 = vpop.f32.mrf.mxu0
      %v744 = vadd.f32 0.0, %v743
      %v745 = vpop.f32.mrf.mxu0
      %v746 = vadd.f32 0.0, %v745
      %747 = vmatmul.bf16.gmra.mxu0 %v702
      %v748 = vpop.f32.mrf.mxu0
      %v749 = vadd.f32 0.0, %v748
      %v750 = vpop.f32.mrf.mxu0
      %v751 = vadd.f32 0.0, %v750
      %752 = vdwg.mxu0
      %v753 = vpack.c.bf16 %v716, %v714
      %v754 = vpack.c.bf16 %v721, %v719
      %v755 = vpack.c.bf16 %v726, %v724
      %v756 = vpack.c.bf16 %v731, %v729
      %v757 = vpack.c.bf16 %v736, %v734
      %v758 = vpack.c.bf16 %v741, %v739
      %v759 = vpack.c.bf16 %v746, %v744
      %v760 = vpack.c.bf16 %v751, %v749
      %v761 = vld [vmem:[%s5] sm:$0x1]
      %v763 = vperm.slane %v761, 0
      %765 = vmatpush.bf16.msra.mxu0 %v760
      %766 = vmatpush.bf16.msra.mxu0 %v759
      %767 = vmatpush.bf16.msra.mxu0 %v758
      %768 = vmatpush.bf16.msra.mxu0 %v757
      %769 = vmatpush.bf16.msra.mxu0 %v756
      %770 = vmatpush.bf16.msra.mxu0 %v755
      %771 = vmatpush.bf16.msra.mxu0 %v754
      %772 = vmatpush.bf16.msra.mxu0 %v753
      %773 = vmatmul.bf16.gmra.mxu0 %v514
      %v774 = vpop.f32.mrf.mxu0
      %v775 = vadd.f32 %v763, %v774
      %v776 = vpop.f32.mrf.mxu0
      %v777 = vadd.f32 %v763, %v776
      %778 = vmatmul.bf16.gmra.mxu0 %v515
      %v779 = vpop.f32.mrf.mxu0
      %v780 = vadd.f32 %v763, %v779
      %v781 = vpop.f32.mrf.mxu0
      %v782 = vadd.f32 %v763, %v781
      %783 = vmatmul.bf16.gmra.mxu0 %v516
      %v784 = vpop.f32.mrf.mxu0
      %v785 = vadd.f32 %v763, %v784
      %v786 = vpop.f32.mrf.mxu0
      %v787 = vadd.f32 %v763, %v786
      %788 = vmatmul.bf16.gmra.mxu0 %v517
      %v789 = vpop.f32.mrf.mxu0
      %v790 = vadd.f32 %v763, %v789
      %v791 = vpop.f32.mrf.mxu0
      %v792 = vadd.f32 %v763, %v791
      %793 = vmatmul.bf16.gmra.mxu0 %v518
      %v794 = vpop.f32.mrf.mxu0
      %v795 = vadd.f32 %v763, %v794
      %v796 = vpop.f32.mrf.mxu0
      %v797 = vadd.f32 %v763, %v796
      %798 = vmatmul.bf16.gmra.mxu0 %v519
      %v799 = vpop.f32.mrf.mxu0
      %v800 = vadd.f32 %v763, %v799
      %v801 = vpop.f32.mrf.mxu0
      %v802 = vadd.f32 %v763, %v801
      %803 = vmatmul.bf16.gmra.mxu0 %v520
      %v804 = vpop.f32.mrf.mxu0
      %v805 = vadd.f32 %v763, %v804
      %v806 = vpop.f32.mrf.mxu0
      %v807 = vadd.f32 %v763, %v806
      %808 = vmatmul.bf16.gmra.mxu0 %v521
      %v809 = vpop.f32.mrf.mxu0
      %v810 = vadd.f32 %v763, %v809
      %v811 = vpop.f32.mrf.mxu0
      %v812 = vadd.f32 %v763, %v811
      %813 = vdwg.mxu0
      %v814 = vmax.f32 %v775, 0.0
      %v815 = vmax.f32 %v777, 0.0
      %v816 = vmax.f32 %v780, 0.0
      %v817 = vmax.f32 %v782, 0.0
      %v818 = vmax.f32 %v785, 0.0
      %v819 = vmax.f32 %v787, 0.0
      %v820 = vmax.f32 %v790, 0.0
      %v821 = vmax.f32 %v792, 0.0
      %v822 = vmax.f32 %v795, 0.0
      %v823 = vmax.f32 %v797, 0.0
      %v824 = vmax.f32 %v800, 0.0
      %v825 = vmax.f32 %v802, 0.0
      %v826 = vmax.f32 %v805, 0.0
      %v827 = vmax.f32 %v807, 0.0
      %v828 = vmax.f32 %v810, 0.0
      %v829 = vmax.f32 %v812, 0.0
      %v830 = vpack.c.bf16 %v815, %v814
      %v831 = vpack.c.bf16 %v817, %v816
      %v832 = vpack.c.bf16 %v819, %v818
      %v833 = vpack.c.bf16 %v821, %v820
      %v834 = vpack.c.bf16 %v823, %v822
      %v835 = vpack.c.bf16 %v825, %v824
      %v836 = vpack.c.bf16 %v827, %v826
      %v837 = vpack.c.bf16 %v829, %v828
      %v838 = vld [vmem:[%s6] sm:$0xf]
      %v839 = vld [vmem:[%s6 + $0x4] sm:$0xf]
      %v840 = vld [vmem:[%s6 + $0x8] sm:$0xf]
      %v841 = vld [vmem:[%s6 + $0xc] sm:$0xf]
      %v846 = vunpack.c.l.b16 %v838
      %v847 = vunpack.c.l.b16 %v839
      %v848 = vunpack.c.l.b16 %v840
      %v849 = vunpack.c.l.b16 %v841
      %v850 = vpack.c.b16 %v847, %v846
      %v851 = vpack.c.b16 %v849, %v848
      %v855 = vsel %vm582, %v830, 0
      %v858 = vsel %vm582, %v831, 0
      %v861 = vsel %vm582, %v832, 0
      %v864 = vsel %vm582, %v833, 0
      %v867 = vsel %vm582, %v834, 0
      %v870 = vsel %vm582, %v835, 0
      %v873 = vsel %vm582, %v836, 0
      %v876 = vsel %vm582, %v837, 0
      %878 = vmatpush.bf16.msra.mxu0 0
      %879 = vmatpush.bf16.msra.mxu0 0
      %880 = vmatpush.bf16.msra.mxu0 0
      %881 = vmatpush.bf16.msra.mxu0 0
      %882 = vmatpush.bf16.msra.mxu0 0
      %883 = vmatpush.bf16.msra.mxu0 0
      %884 = vmatpush.bf16.msra.mxu0 %v851
      %885 = vmatpush.bf16.msra.mxu0 %v850
      %886 = vmatmul.bf16.gmra.mxu0 %v855
      %v887 = vpop.f32.mrf.mxu0
      %v888 = vadd.f32 0.0, %v887
      %v889 = vpop.f32.mrf.mxu0
      %v890 = vadd.f32 0.0, %v889
      %891 = vmatmul.bf16.gmra.mxu0 %v858
      %v892 = vpop.f32.mrf.mxu0
      %v893 = vadd.f32 0.0, %v892
      %v894 = vpop.f32.mrf.mxu0
      %v895 = vadd.f32 0.0, %v894
      %896 = vmatmul.bf16.gmra.mxu0 %v861
      %v897 = vpop.f32.mrf.mxu0
      %v898 = vadd.f32 0.0, %v897
      %v899 = vpop.f32.mrf.mxu0
      %v900 = vadd.f32 0.0, %v899
      %901 = vmatmul.bf16.gmra.mxu0 %v864
      %v902 = vpop.f32.mrf.mxu0
      %v903 = vadd.f32 0.0, %v902
      %v904 = vpop.f32.mrf.mxu0
      %v905 = vadd.f32 0.0, %v904
      %906 = vmatmul.bf16.gmra.mxu0 %v867
      %v907 = vpop.f32.mrf.mxu0
      %v908 = vadd.f32 0.0, %v907
      %v909 = vpop.f32.mrf.mxu0
      %v910 = vadd.f32 0.0, %v909
      %911 = vmatmul.bf16.gmra.mxu0 %v870
      %v912 = vpop.f32.mrf.mxu0
      %v913 = vadd.f32 0.0, %v912
      %v914 = vpop.f32.mrf.mxu0
      %v915 = vadd.f32 0.0, %v914
      %916 = vmatmul.bf16.gmra.mxu0 %v873
      %v917 = vpop.f32.mrf.mxu0
      %v918 = vadd.f32 0.0, %v917
      %v919 = vpop.f32.mrf.mxu0
      %v920 = vadd.f32 0.0, %v919
      %921 = vmatmul.bf16.gmra.mxu0 %v876
      %v922 = vpop.f32.mrf.mxu0
      %v923 = vadd.f32 0.0, %v922
      %v924 = vpop.f32.mrf.mxu0
      %v925 = vadd.f32 0.0, %v924
      %926 = vdwg.mxu0
      %v927 = vpack.c.bf16 %v890, %v888
      %v928 = vpack.c.bf16 %v895, %v893
      %v929 = vpack.c.bf16 %v900, %v898
      %v930 = vpack.c.bf16 %v905, %v903
      %v931 = vpack.c.bf16 %v910, %v908
      %v932 = vpack.c.bf16 %v915, %v913
      %v933 = vpack.c.bf16 %v920, %v918
      %v934 = vpack.c.bf16 %v925, %v923
      %v935 = vld [vmem:[%s7] sm:$0x1]
      %v937 = vperm.slane %v935, 0
      %939 = vmatpush.bf16.msra.mxu0 %v934
      %940 = vmatpush.bf16.msra.mxu0 %v933
      %941 = vmatpush.bf16.msra.mxu0 %v932
      %942 = vmatpush.bf16.msra.mxu0 %v931
      %943 = vmatpush.bf16.msra.mxu0 %v930
      %944 = vmatpush.bf16.msra.mxu0 %v929
      %945 = vmatpush.bf16.msra.mxu0 %v928
      %946 = vmatpush.bf16.msra.mxu0 %v927
      %947 = vmatmul.bf16.gmra.mxu0 %v514
      %v948 = vpop.f32.mrf.mxu0
      %v949 = vadd.f32 %v937, %v948
      %v950 = vpop.f32.mrf.mxu0
      %v951 = vadd.f32 %v937, %v950
      %952 = vmatmul.bf16.gmra.mxu0 %v515
      %v953 = vpop.f32.mrf.mxu0
      %v954 = vadd.f32 %v937, %v953
      %v955 = vpop.f32.mrf.mxu0
      %v956 = vadd.f32 %v937, %v955
      %957 = vmatmul.bf16.gmra.mxu0 %v516
      %v958 = vpop.f32.mrf.mxu0
      %v959 = vadd.f32 %v937, %v958
      %v960 = vpop.f32.mrf.mxu0
      %v961 = vadd.f32 %v937, %v960
      %962 = vmatmul.bf16.gmra.mxu0 %v517
      %v963 = vpop.f32.mrf.mxu0
      %v964 = vadd.f32 %v937, %v963
      %v965 = vpop.f32.mrf.mxu0
      %v966 = vadd.f32 %v937, %v965
      %967 = vmatmul.bf16.gmra.mxu0 %v518
      %v968 = vpop.f32.mrf.mxu0
      %v969 = vadd.f32 %v937, %v968
      %v970 = vpop.f32.mrf.mxu0
      %v971 = vadd.f32 %v937, %v970
      %972 = vmatmul.bf16.gmra.mxu0 %v519
      %v973 = vpop.f32.mrf.mxu0
      %v974 = vadd.f32 %v937, %v973
      %v975 = vpop.f32.mrf.mxu0
      %v976 = vadd.f32 %v937, %v975
      %977 = vmatmul.bf16.gmra.mxu0 %v520
      %v978 = vpop.f32.mrf.mxu0
      %v979 = vadd.f32 %v937, %v978
      %v980 = vpop.f32.mrf.mxu0
      %v981 = vadd.f32 %v937, %v980
      %982 = vmatmul.bf16.gmra.mxu0 %v521
      %v983 = vpop.f32.mrf.mxu0
      %v984 = vadd.f32 %v937, %v983
      %v985 = vpop.f32.mrf.mxu0
      %v986 = vadd.f32 %v937, %v985
      %987 = vdwg.mxu0
      %v988 = vmax.f32 %v949, 0.0
      %v989 = vmax.f32 %v951, 0.0
      %v990 = vmax.f32 %v954, 0.0
      %v991 = vmax.f32 %v956, 0.0
      %v992 = vmax.f32 %v959, 0.0
      %v993 = vmax.f32 %v961, 0.0
      %v994 = vmax.f32 %v964, 0.0
      %v995 = vmax.f32 %v966, 0.0
      %v996 = vmax.f32 %v969, 0.0
      %v997 = vmax.f32 %v971, 0.0
      %v998 = vmax.f32 %v974, 0.0
      %v999 = vmax.f32 %v976, 0.0
      %v1000 = vmax.f32 %v979, 0.0
      %v1001 = vmax.f32 %v981, 0.0
      %v1002 = vmax.f32 %v984, 0.0
      %v1003 = vmax.f32 %v986, 0.0
      %v1004 = vpack.c.bf16 %v989, %v988
      %v1005 = vpack.c.bf16 %v991, %v990
      %v1006 = vpack.c.bf16 %v993, %v992
      %v1007 = vpack.c.bf16 %v995, %v994
      %v1008 = vpack.c.bf16 %v997, %v996
      %v1009 = vpack.c.bf16 %v999, %v998
      %v1010 = vpack.c.bf16 %v1001, %v1000
      %v1011 = vpack.c.bf16 %v1003, %v1002
      %v1012 = vld [vmem:[%s8] sm:$0xf]
      %v1013 = vld [vmem:[%s8 + $0x4] sm:$0xf]
      %v1014 = vld [vmem:[%s8 + $0x8] sm:$0xf]
      %v1015 = vld [vmem:[%s8 + $0xc] sm:$0xf]
      %v1020 = vunpack.c.l.b16 %v1012
      %v1021 = vunpack.c.l.b16 %v1013
      %v1022 = vunpack.c.l.b16 %v1014
      %v1023 = vunpack.c.l.b16 %v1015
      %v1024 = vpack.c.b16 %v1021, %v1020
      %v1025 = vpack.c.b16 %v1023, %v1022
      %v1029 = vsel %vm582, %v1004, 0
      %v1032 = vsel %vm582, %v1005, 0
      %v1035 = vsel %vm582, %v1006, 0
      %v1038 = vsel %vm582, %v1007, 0
      %v1041 = vsel %vm582, %v1008, 0
      %v1044 = vsel %vm582, %v1009, 0
      %v1047 = vsel %vm582, %v1010, 0
      %v1050 = vsel %vm582, %v1011, 0
      %1052 = vmatpush.bf16.msra.mxu0 0
      %1053 = vmatpush.bf16.msra.mxu0 0
      %1054 = vmatpush.bf16.msra.mxu0 0
      %1055 = vmatpush.bf16.msra.mxu0 0
      %1056 = vmatpush.bf16.msra.mxu0 0
      %1057 = vmatpush.bf16.msra.mxu0 0
      %1058 = vmatpush.bf16.msra.mxu0 %v1025
      %1059 = vmatpush.bf16.msra.mxu0 %v1024
      %1060 = vmatmul.bf16.gmra.mxu0 %v1029
      %v1061 = vpop.f32.mrf.mxu0
      %v1062 = vadd.f32 0.0, %v1061
      %v1063 = vpop.f32.mrf.mxu0
      %v1064 = vadd.f32 0.0, %v1063
      %1065 = vmatmul.bf16.gmra.mxu0 %v1032
      %v1066 = vpop.f32.mrf.mxu0
      %v1067 = vadd.f32 0.0, %v1066
      %v1068 = vpop.f32.mrf.mxu0
      %v1069 = vadd.f32 0.0, %v1068
      %1070 = vmatmul.bf16.gmra.mxu0 %v1035
      %v1071 = vpop.f32.mrf.mxu0
      %v1072 = vadd.f32 0.0, %v1071
      %v1073 = vpop.f32.mrf.mxu0
      %v1074 = vadd.f32 0.0, %v1073
      %1075 = vmatmul.bf16.gmra.mxu0 %v1038
      %v1076 = vpop.f32.mrf.mxu0
      %v1077 = vadd.f32 0.0, %v1076
      %v1078 = vpop.f32.mrf.mxu0
      %v1079 = vadd.f32 0.0, %v1078
      %1080 = vmatmul.bf16.gmra.mxu0 %v1041
      %v1081 = vpop.f32.mrf.mxu0
      %v1082 = vadd.f32 0.0, %v1081
      %v1083 = vpop.f32.mrf.mxu0
      %v1084 = vadd.f32 0.0, %v1083
      %1085 = vmatmul.bf16.gmra.mxu0 %v1044
      %v1086 = vpop.f32.mrf.mxu0
      %v1087 = vadd.f32 0.0, %v1086
      %v1088 = vpop.f32.mrf.mxu0
      %v1089 = vadd.f32 0.0, %v1088
      %1090 = vmatmul.bf16.gmra.mxu0 %v1047
      %v1091 = vpop.f32.mrf.mxu0
      %v1092 = vadd.f32 0.0, %v1091
      %v1093 = vpop.f32.mrf.mxu0
      %v1094 = vadd.f32 0.0, %v1093
      %1095 = vmatmul.bf16.gmra.mxu0 %v1050
      %v1096 = vpop.f32.mrf.mxu0
      %v1097 = vadd.f32 0.0, %v1096
      %v1098 = vpop.f32.mrf.mxu0
      %v1099 = vadd.f32 0.0, %v1098
      %1100 = vdwg.mxu0
      %v1101 = vpack.c.bf16 %v1064, %v1062
      %v1102 = vpack.c.bf16 %v1069, %v1067
      %v1103 = vpack.c.bf16 %v1074, %v1072
      %v1104 = vpack.c.bf16 %v1079, %v1077
      %v1105 = vpack.c.bf16 %v1084, %v1082
      %v1106 = vpack.c.bf16 %v1089, %v1087
      %v1107 = vpack.c.bf16 %v1094, %v1092
      %v1108 = vpack.c.bf16 %v1099, %v1097
      %v1109 = vld [vmem:[%s9] sm:$0x1]
      %v1111 = vperm.slane %v1109, 0
      %1113 = vmatpush.bf16.msra.mxu0 %v1108
      %1114 = vmatpush.bf16.msra.mxu0 %v1107
      %1115 = vmatpush.bf16.msra.mxu0 %v1106
      %1116 = vmatpush.bf16.msra.mxu0 %v1105
      %1117 = vmatpush.bf16.msra.mxu0 %v1104
      %1118 = vmatpush.bf16.msra.mxu0 %v1103
      %1119 = vmatpush.bf16.msra.mxu0 %v1102
      %1120 = vmatpush.bf16.msra.mxu0 %v1101
      %1121 = vmatmul.bf16.gmra.mxu0 %v514
      %v1122 = vpop.f32.mrf.mxu0
      %v1123 = vadd.f32 %v1111, %v1122
      %v1124 = vpop.f32.mrf.mxu0
      %v1125 = vadd.f32 %v1111, %v1124
      %1126 = vmatmul.bf16.gmra.mxu0 %v515
      %v1127 = vpop.f32.mrf.mxu0
      %v1128 = vadd.f32 %v1111, %v1127
      %v1129 = vpop.f32.mrf.mxu0
      %v1130 = vadd.f32 %v1111, %v1129
      %1131 = vmatmul.bf16.gmra.mxu0 %v516
      %v1132 = vpop.f32.mrf.mxu0
      %v1133 = vadd.f32 %v1111, %v1132
      %v1134 = vpop.f32.mrf.mxu0
      %v1135 = vadd.f32 %v1111, %v1134
      %1136 = vmatmul.bf16.gmra.mxu0 %v517
      %v1137 = vpop.f32.mrf.mxu0
      %v1138 = vadd.f32 %v1111, %v1137
      %v1139 = vpop.f32.mrf.mxu0
      %v1140 = vadd.f32 %v1111, %v1139
      %1141 = vmatmul.bf16.gmra.mxu0 %v518
      %v1142 = vpop.f32.mrf.mxu0
      %v1143 = vadd.f32 %v1111, %v1142
      %v1144 = vpop.f32.mrf.mxu0
      %v1145 = vadd.f32 %v1111, %v1144
      %1146 = vmatmul.bf16.gmra.mxu0 %v519
      %v1147 = vpop.f32.mrf.mxu0
      %v1148 = vadd.f32 %v1111, %v1147
      %v1149 = vpop.f32.mrf.mxu0
      %v1150 = vadd.f32 %v1111, %v1149
      %1151 = vmatmul.bf16.gmra.mxu0 %v520
      %v1152 = vpop.f32.mrf.mxu0
      %v1153 = vadd.f32 %v1111, %v1152
      %v1154 = vpop.f32.mrf.mxu0
      %v1155 = vadd.f32 %v1111, %v1154
      %1156 = vmatmul.bf16.gmra.mxu0 %v521
      %v1157 = vpop.f32.mrf.mxu0
      %v1158 = vadd.f32 %v1111, %v1157
      %v1159 = vpop.f32.mrf.mxu0
      %v1160 = vadd.f32 %v1111, %v1159
      %1161 = vdwg.mxu0
      %v1162 = vmax.f32 %v1123, 0.0
      %v1163 = vmax.f32 %v1125, 0.0
      %v1164 = vmax.f32 %v1128, 0.0
      %v1165 = vmax.f32 %v1130, 0.0
      %v1166 = vmax.f32 %v1133, 0.0
      %v1167 = vmax.f32 %v1135, 0.0
      %v1168 = vmax.f32 %v1138, 0.0
      %v1169 = vmax.f32 %v1140, 0.0
      %v1170 = vmax.f32 %v1143, 0.0
      %v1171 = vmax.f32 %v1145, 0.0
      %v1172 = vmax.f32 %v1148, 0.0
      %v1173 = vmax.f32 %v1150, 0.0
      %v1174 = vmax.f32 %v1153, 0.0
      %v1175 = vmax.f32 %v1155, 0.0
      %v1176 = vmax.f32 %v1158, 0.0
      %v1177 = vmax.f32 %v1160, 0.0
      %v1178 = vpack.c.bf16 %v1163, %v1162
      %v1179 = vpack.c.bf16 %v1165, %v1164
      %v1180 = vpack.c.bf16 %v1167, %v1166
      %v1181 = vpack.c.bf16 %v1169, %v1168
      %v1182 = vpack.c.bf16 %v1171, %v1170
      %v1183 = vpack.c.bf16 %v1173, %v1172
      %v1184 = vpack.c.bf16 %v1175, %v1174
      %v1185 = vpack.c.bf16 %v1177, %v1176
      %v1186 = vld [vmem:[%s10] sm:$0xf]
      %v1187 = vld [vmem:[%s10 + $0x4] sm:$0xf]
      %v1188 = vld [vmem:[%s10 + $0x8] sm:$0xf]
      %v1189 = vld [vmem:[%s10 + $0xc] sm:$0xf]
      %v1194 = vunpack.c.l.b16 %v1186
      %v1195 = vunpack.c.l.b16 %v1187
      %v1196 = vunpack.c.l.b16 %v1188
      %v1197 = vunpack.c.l.b16 %v1189
      %v1198 = vpack.c.b16 %v1195, %v1194
      %v1199 = vpack.c.b16 %v1197, %v1196
      %v1203 = vsel %vm582, %v1178, 0
      %v1206 = vsel %vm582, %v1179, 0
      %v1209 = vsel %vm582, %v1180, 0
      %v1212 = vsel %vm582, %v1181, 0
      %v1215 = vsel %vm582, %v1182, 0
      %v1218 = vsel %vm582, %v1183, 0
      %v1221 = vsel %vm582, %v1184, 0
      %v1224 = vsel %vm582, %v1185, 0
      %1226 = vmatpush.bf16.msra.mxu0 0
      %1227 = vmatpush.bf16.msra.mxu0 0
      %1228 = vmatpush.bf16.msra.mxu0 0
      %1229 = vmatpush.bf16.msra.mxu0 0
      %1230 = vmatpush.bf16.msra.mxu0 0
      %1231 = vmatpush.bf16.msra.mxu0 0
      %1232 = vmatpush.bf16.msra.mxu0 %v1199
      %1233 = vmatpush.bf16.msra.mxu0 %v1198
      %1234 = vmatmul.bf16.gmra.mxu0 %v1203
      %v1235 = vpop.f32.mrf.mxu0
      %v1236 = vadd.f32 0.0, %v1235
      %v1237 = vpop.f32.mrf.mxu0
      %v1238 = vadd.f32 0.0, %v1237
      %1239 = vmatmul.bf16.gmra.mxu0 %v1206
      %v1240 = vpop.f32.mrf.mxu0
      %v1241 = vadd.f32 0.0, %v1240
      %v1242 = vpop.f32.mrf.mxu0
      %v1243 = vadd.f32 0.0, %v1242
      %1244 = vmatmul.bf16.gmra.mxu0 %v1209
      %v1245 = vpop.f32.mrf.mxu0
      %v1246 = vadd.f32 0.0, %v1245
      %v1247 = vpop.f32.mrf.mxu0
      %v1248 = vadd.f32 0.0, %v1247
      %1249 = vmatmul.bf16.gmra.mxu0 %v1212
      %v1250 = vpop.f32.mrf.mxu0
      %v1251 = vadd.f32 0.0, %v1250
      %v1252 = vpop.f32.mrf.mxu0
      %v1253 = vadd.f32 0.0, %v1252
      %1254 = vmatmul.bf16.gmra.mxu0 %v1215
      %v1255 = vpop.f32.mrf.mxu0
      %v1256 = vadd.f32 0.0, %v1255
      %v1257 = vpop.f32.mrf.mxu0
      %v1258 = vadd.f32 0.0, %v1257
      %1259 = vmatmul.bf16.gmra.mxu0 %v1218
      %v1260 = vpop.f32.mrf.mxu0
      %v1261 = vadd.f32 0.0, %v1260
      %v1262 = vpop.f32.mrf.mxu0
      %v1263 = vadd.f32 0.0, %v1262
      %1264 = vmatmul.bf16.gmra.mxu0 %v1221
      %v1265 = vpop.f32.mrf.mxu0
      %v1266 = vadd.f32 0.0, %v1265
      %v1267 = vpop.f32.mrf.mxu0
      %v1268 = vadd.f32 0.0, %v1267
      %1269 = vmatmul.bf16.gmra.mxu0 %v1224
      %v1270 = vpop.f32.mrf.mxu0
      %v1271 = vadd.f32 0.0, %v1270
      %v1272 = vpop.f32.mrf.mxu0
      %v1273 = vadd.f32 0.0, %v1272
      %1274 = vdwg.mxu0
      %v1275 = vpack.c.bf16 %v1238, %v1236
      %v1276 = vpack.c.bf16 %v1243, %v1241
      %v1277 = vpack.c.bf16 %v1248, %v1246
      %v1278 = vpack.c.bf16 %v1253, %v1251
      %v1279 = vpack.c.bf16 %v1258, %v1256
      %v1280 = vpack.c.bf16 %v1263, %v1261
      %v1281 = vpack.c.bf16 %v1268, %v1266
      %v1282 = vpack.c.bf16 %v1273, %v1271
      %v1283 = vld [vmem:[%s11] sm:$0x1]
      %v1285 = vperm.slane %v1283, 0
      %1287 = vmatpush.bf16.msra.mxu0 %v1282
      %1288 = vmatpush.bf16.msra.mxu0 %v1281
      %1289 = vmatpush.bf16.msra.mxu0 %v1280
      %1290 = vmatpush.bf16.msra.mxu0 %v1279
      %1291 = vmatpush.bf16.msra.mxu0 %v1278
      %1292 = vmatpush.bf16.msra.mxu0 %v1277
      %1293 = vmatpush.bf16.msra.mxu0 %v1276
      %1294 = vmatpush.bf16.msra.mxu0 %v1275
      %1295 = vmatmul.bf16.gmra.mxu0 %v514
      %v1296 = vpop.f32.mrf.mxu0
      %v1297 = vadd.f32 %v1285, %v1296
      %v1298 = vpop.f32.mrf.mxu0
      %v1299 = vadd.f32 %v1285, %v1298
      %1300 = vmatmul.bf16.gmra.mxu0 %v515
      %v1301 = vpop.f32.mrf.mxu0
      %v1302 = vadd.f32 %v1285, %v1301
      %v1303 = vpop.f32.mrf.mxu0
      %v1304 = vadd.f32 %v1285, %v1303
      %1305 = vmatmul.bf16.gmra.mxu0 %v516
      %v1306 = vpop.f32.mrf.mxu0
      %v1307 = vadd.f32 %v1285, %v1306
      %v1308 = vpop.f32.mrf.mxu0
      %v1309 = vadd.f32 %v1285, %v1308
      %1310 = vmatmul.bf16.gmra.mxu0 %v517
      %v1311 = vpop.f32.mrf.mxu0
      %v1312 = vadd.f32 %v1285, %v1311
      %v1313 = vpop.f32.mrf.mxu0
      %v1314 = vadd.f32 %v1285, %v1313
      %1315 = vmatmul.bf16.gmra.mxu0 %v518
      %v1316 = vpop.f32.mrf.mxu0
      %v1317 = vadd.f32 %v1285, %v1316
      %v1318 = vpop.f32.mrf.mxu0
      %v1319 = vadd.f32 %v1285, %v1318
      %1320 = vmatmul.bf16.gmra.mxu0 %v519
      %v1321 = vpop.f32.mrf.mxu0
      %v1322 = vadd.f32 %v1285, %v1321
      %v1323 = vpop.f32.mrf.mxu0
      %v1324 = vadd.f32 %v1285, %v1323
      %1325 = vmatmul.bf16.gmra.mxu0 %v520
      %v1326 = vpop.f32.mrf.mxu0
      %v1327 = vadd.f32 %v1285, %v1326
      %v1328 = vpop.f32.mrf.mxu0
      %v1329 = vadd.f32 %v1285, %v1328
      %1330 = vmatmul.bf16.gmra.mxu0 %v521
      %v1331 = vpop.f32.mrf.mxu0
      %v1332 = vadd.f32 %v1285, %v1331
      %v1333 = vpop.f32.mrf.mxu0
      %v1334 = vadd.f32 %v1285, %v1333
      %1335 = vdwg.mxu0
      %v1336 = vmax.f32 %v1297, 0.0
      %v1337 = vmax.f32 %v1299, 0.0
      %v1338 = vmax.f32 %v1302, 0.0
      %v1339 = vmax.f32 %v1304, 0.0
      %v1340 = vmax.f32 %v1307, 0.0
      %v1341 = vmax.f32 %v1309, 0.0
      %v1342 = vmax.f32 %v1312, 0.0
      %v1343 = vmax.f32 %v1314, 0.0
      %v1344 = vmax.f32 %v1317, 0.0
      %v1345 = vmax.f32 %v1319, 0.0
      %v1346 = vmax.f32 %v1322, 0.0
      %v1347 = vmax.f32 %v1324, 0.0
      %v1348 = vmax.f32 %v1327, 0.0
      %v1349 = vmax.f32 %v1329, 0.0
      %v1350 = vmax.f32 %v1332, 0.0
      %v1351 = vmax.f32 %v1334, 0.0
      %1368 = vrot.lane.b32.xlu0 %v988, 96
      %v1369 = vpop.permute.xlu0 %1368
      %1370 = vrot.lane.b32.xlu0 %v989, 96
      %v1371 = vpop.permute.xlu0 %1370
      %1372 = vrot.lane.b32.xlu0 %v990, 96
      %v1373 = vpop.permute.xlu0 %1372
      %1374 = vrot.lane.b32.xlu0 %v991, 96
      %v1375 = vpop.permute.xlu0 %1374
      %1376 = vrot.lane.b32.xlu0 %v992, 96
      %v1377 = vpop.permute.xlu0 %1376
      %1378 = vrot.lane.b32.xlu0 %v993, 96
      %v1379 = vpop.permute.xlu0 %1378
      %1380 = vrot.lane.b32.xlu0 %v994, 96
      %v1381 = vpop.permute.xlu0 %1380
      %1382 = vrot.lane.b32.xlu0 %v995, 96
      %v1383 = vpop.permute.xlu0 %1382
      %1384 = vrot.lane.b32.xlu0 %v996, 96
      %v1385 = vpop.permute.xlu0 %1384
      %1386 = vrot.lane.b32.xlu0 %v997, 96
      %v1387 = vpop.permute.xlu0 %1386
      %1388 = vrot.lane.b32.xlu0 %v998, 96
      %v1389 = vpop.permute.xlu0 %1388
      %1390 = vrot.lane.b32.xlu0 %v999, 96
      %v1391 = vpop.permute.xlu0 %1390
      %1392 = vrot.lane.b32.xlu0 %v1000, 96
      %v1393 = vpop.permute.xlu0 %1392
      %1394 = vrot.lane.b32.xlu0 %v1001, 96
      %v1395 = vpop.permute.xlu0 %1394
      %1396 = vrot.lane.b32.xlu0 %v1002, 96
      %v1397 = vpop.permute.xlu0 %1396
      %1398 = vrot.lane.b32.xlu0 %v1003, 96
      %v1399 = vpop.permute.xlu0 %1398
      %1432 = vrot.lane.b32.xlu0 %v1336, 64
      %v1433 = vpop.permute.xlu0 %1432
      %1434 = vrot.lane.b32.xlu0 %v1337, 64
      %v1435 = vpop.permute.xlu0 %1434
      %1436 = vrot.lane.b32.xlu0 %v1338, 64
      %v1437 = vpop.permute.xlu0 %1436
      %1438 = vrot.lane.b32.xlu0 %v1339, 64
      %v1439 = vpop.permute.xlu0 %1438
      %1440 = vrot.lane.b32.xlu0 %v1340, 64
      %v1441 = vpop.permute.xlu0 %1440
      %1442 = vrot.lane.b32.xlu0 %v1341, 64
      %v1443 = vpop.permute.xlu0 %1442
      %1444 = vrot.lane.b32.xlu0 %v1342, 64
      %v1445 = vpop.permute.xlu0 %1444
      %1446 = vrot.lane.b32.xlu0 %v1343, 64
      %v1447 = vpop.permute.xlu0 %1446
      %1448 = vrot.lane.b32.xlu0 %v1344, 64
      %v1449 = vpop.permute.xlu0 %1448
      %1450 = vrot.lane.b32.xlu0 %v1345, 64
      %v1451 = vpop.permute.xlu0 %1450
      %1452 = vrot.lane.b32.xlu0 %v1346, 64
      %v1453 = vpop.permute.xlu0 %1452
      %1454 = vrot.lane.b32.xlu0 %v1347, 64
      %v1455 = vpop.permute.xlu0 %1454
      %1456 = vrot.lane.b32.xlu0 %v1348, 64
      %v1457 = vpop.permute.xlu0 %1456
      %1458 = vrot.lane.b32.xlu0 %v1349, 64
      %v1459 = vpop.permute.xlu0 %1458
      %1460 = vrot.lane.b32.xlu0 %v1350, 64
      %v1461 = vpop.permute.xlu0 %1460
      %1462 = vrot.lane.b32.xlu0 %v1351, 64
      %v1463 = vpop.permute.xlu0 %1462
      %v1480 = vsel %vm582, %v1369, %v1162
      %v1481 = vsel %vm582, %v1371, %v1163
      %v1482 = vsel %vm582, %v1373, %v1164
      %v1483 = vsel %vm582, %v1375, %v1165
      %v1484 = vsel %vm582, %v1377, %v1166
      %v1485 = vsel %vm582, %v1379, %v1167
      %v1486 = vsel %vm582, %v1381, %v1168
      %v1487 = vsel %vm582, %v1383, %v1169
      %v1488 = vsel %vm582, %v1385, %v1170
      %v1489 = vsel %vm582, %v1387, %v1171
      %v1490 = vsel %vm582, %v1389, %v1172
      %v1491 = vsel %vm582, %v1391, %v1173
      %v1492 = vsel %vm582, %v1393, %v1174
      %v1493 = vsel %vm582, %v1395, %v1175
      %v1494 = vsel %vm582, %v1397, %v1176
      %v1495 = vsel %vm582, %v1399, %v1177
      %vm1496 = vcmask 523264
      %v1497 = vsel %vm1496, %v1480, %v1433
      %v1498 = vsel %vm1496, %v1481, %v1435
      %v1499 = vsel %vm1496, %v1482, %v1437
      %v1500 = vsel %vm1496, %v1483, %v1439
      %v1501 = vsel %vm1496, %v1484, %v1441
      %v1502 = vsel %vm1496, %v1485, %v1443
      %v1503 = vsel %vm1496, %v1486, %v1445
      %v1504 = vsel %vm1496, %v1487, %v1447
      %v1505 = vsel %vm1496, %v1488, %v1449
      %v1506 = vsel %vm1496, %v1489, %v1451
      %v1507 = vsel %vm1496, %v1490, %v1453
      %v1508 = vsel %vm1496, %v1491, %v1455
      %v1509 = vsel %vm1496, %v1492, %v1457
      %v1510 = vsel %vm1496, %v1493, %v1459
      %v1511 = vsel %vm1496, %v1494, %v1461
      %v1512 = vsel %vm1496, %v1495, %v1463
      %v1513 = vld [vmem:[%s12] sm:$0x1]
      %v1515 = vperm.slane %v1513, 0
      %v1517 = vmul.f32 %v1497, %v1515
      %v1518 = vmul.f32 %v1498, %v1515
      %v1519 = vmul.f32 %v1499, %v1515
      %v1520 = vmul.f32 %v1500, %v1515
      %v1521 = vmul.f32 %v1501, %v1515
      %v1522 = vmul.f32 %v1502, %v1515
      %v1523 = vmul.f32 %v1503, %v1515
      %v1524 = vmul.f32 %v1504, %v1515
      %v1525 = vmul.f32 %v1505, %v1515
      %v1526 = vmul.f32 %v1506, %v1515
      %v1527 = vmul.f32 %v1507, %v1515
      %v1528 = vmul.f32 %v1508, %v1515
      %v1529 = vmul.f32 %v1509, %v1515
      %v1530 = vmul.f32 %v1510, %v1515
      %v1531 = vmul.f32 %v1511, %v1515
      %v1532 = vmul.f32 %v1512, %v1515
      %vm1533 = vcmask 785408
      %v1534 = vsel %vm1533, %v1517, 0.0
      %1535 = vadd.xlane.f32.xlu0 %v1534
      %v1536 = vpop.xlane.xlu0 %1535
      %v1537 = vsel %vm1533, %v1518, 0.0
      %1538 = vadd.xlane.f32.xlu0 %v1537
      %v1539 = vpop.xlane.xlu0 %1538
      %v1540 = vsel %vm1533, %v1519, 0.0
      %1541 = vadd.xlane.f32.xlu0 %v1540
      %v1542 = vpop.xlane.xlu0 %1541
      %v1543 = vsel %vm1533, %v1520, 0.0
      %1544 = vadd.xlane.f32.xlu0 %v1543
      %v1545 = vpop.xlane.xlu0 %1544
      %v1546 = vsel %vm1533, %v1521, 0.0
      %1547 = vadd.xlane.f32.xlu0 %v1546
      %v1548 = vpop.xlane.xlu0 %1547
      %v1549 = vsel %vm1533, %v1522, 0.0
      %1550 = vadd.xlane.f32.xlu0 %v1549
      %v1551 = vpop.xlane.xlu0 %1550
      %v1552 = vsel %vm1533, %v1523, 0.0
      %1553 = vadd.xlane.f32.xlu0 %v1552
      %v1554 = vpop.xlane.xlu0 %1553
      %v1555 = vsel %vm1533, %v1524, 0.0
      %1556 = vadd.xlane.f32.xlu0 %v1555
      %v1557 = vpop.xlane.xlu0 %1556
      %v1558 = vsel %vm1533, %v1525, 0.0
      %1559 = vadd.xlane.f32.xlu0 %v1558
      %v1560 = vpop.xlane.xlu0 %1559
      %v1561 = vsel %vm1533, %v1526, 0.0
      %1562 = vadd.xlane.f32.xlu0 %v1561
      %v1563 = vpop.xlane.xlu0 %1562
      %v1564 = vsel %vm1533, %v1527, 0.0
      %1565 = vadd.xlane.f32.xlu0 %v1564
      %v1566 = vpop.xlane.xlu0 %1565
      %v1567 = vsel %vm1533, %v1528, 0.0
      %1568 = vadd.xlane.f32.xlu0 %v1567
      %v1569 = vpop.xlane.xlu0 %1568
      %v1570 = vsel %vm1533, %v1529, 0.0
      %1571 = vadd.xlane.f32.xlu0 %v1570
      %v1572 = vpop.xlane.xlu0 %1571
      %v1573 = vsel %vm1533, %v1530, 0.0
      %1574 = vadd.xlane.f32.xlu0 %v1573
      %v1575 = vpop.xlane.xlu0 %1574
      %v1576 = vsel %vm1533, %v1531, 0.0
      %1577 = vadd.xlane.f32.xlu0 %v1576
      %v1578 = vpop.xlane.xlu0 %1577
      %v1579 = vsel %vm1533, %v1532, 0.0
      %1580 = vadd.xlane.f32.xlu0 %v1579
      %v1581 = vpop.xlane.xlu0 %1580
      %v1582 = vxor.u32 %v1536, 2147483648
      %v1583 = vxor.u32 %v1539, 2147483648
      %v1584 = vxor.u32 %v1542, 2147483648
      %v1585 = vxor.u32 %v1545, 2147483648
      %v1586 = vxor.u32 %v1548, 2147483648
      %v1587 = vxor.u32 %v1551, 2147483648
      %v1588 = vxor.u32 %v1554, 2147483648
      %v1589 = vxor.u32 %v1557, 2147483648
      %v1590 = vxor.u32 %v1560, 2147483648
      %v1591 = vxor.u32 %v1563, 2147483648
      %v1592 = vxor.u32 %v1566, 2147483648
      %v1593 = vxor.u32 %v1569, 2147483648
      %v1594 = vxor.u32 %v1572, 2147483648
      %v1595 = vxor.u32 %v1575, 2147483648
      %v1596 = vxor.u32 %v1578, 2147483648
      %v1597 = vxor.u32 %v1581, 2147483648
      %v1598 = vmul.f32 %v1582, 1.442695
      %v1599 = vpow.pop %v1598
      %v1600 = vmul.f32 %v1583, 1.442695
      %v1601 = vpow.pop %v1600
      %v1602 = vmul.f32 %v1584, 1.442695
      %v1603 = vpow.pop %v1602
      %v1604 = vmul.f32 %v1585, 1.442695
      %v1605 = vpow.pop %v1604
      %v1606 = vmul.f32 %v1586, 1.442695
      %v1607 = vpow.pop %v1606
      %v1608 = vmul.f32 %v1587, 1.442695
      %v1609 = vpow.pop %v1608
      %v1610 = vmul.f32 %v1588, 1.442695
      %v1611 = vpow.pop %v1610
      %v1612 = vmul.f32 %v1589, 1.442695
      %v1613 = vpow.pop %v1612
      %v1614 = vmul.f32 %v1590, 1.442695
      %v1615 = vpow.pop %v1614
      %v1616 = vmul.f32 %v1591, 1.442695
      %v1617 = vpow.pop %v1616
      %v1618 = vmul.f32 %v1592, 1.442695
      %v1619 = vpow.pop %v1618
      %v1620 = vmul.f32 %v1593, 1.442695
      %v1621 = vpow.pop %v1620
      %v1622 = vmul.f32 %v1594, 1.442695
      %v1623 = vpow.pop %v1622
      %v1624 = vmul.f32 %v1595, 1.442695
      %v1625 = vpow.pop %v1624
      %v1626 = vmul.f32 %v1596, 1.442695
      %v1627 = vpow.pop %v1626
      %v1628 = vmul.f32 %v1597, 1.442695
      %v1629 = vpow.pop %v1628
      %v1630 = vadd.f32 %v1599, 1.0
      %v1631 = vadd.f32 %v1601, 1.0
      %v1632 = vadd.f32 %v1603, 1.0
      %v1633 = vadd.f32 %v1605, 1.0
      %v1634 = vadd.f32 %v1607, 1.0
      %v1635 = vadd.f32 %v1609, 1.0
      %v1636 = vadd.f32 %v1611, 1.0
      %v1637 = vadd.f32 %v1613, 1.0
      %v1638 = vadd.f32 %v1615, 1.0
      %v1639 = vadd.f32 %v1617, 1.0
      %v1640 = vadd.f32 %v1619, 1.0
      %v1641 = vadd.f32 %v1621, 1.0
      %v1642 = vadd.f32 %v1623, 1.0
      %v1643 = vadd.f32 %v1625, 1.0
      %v1644 = vadd.f32 %v1627, 1.0
      %v1645 = vadd.f32 %v1629, 1.0
      %v1646 = vrcp.pop %v1630
      %v1647 = vmul.f32 %v1630, %v1646
      %v1648 = vsub.f32 1.0, %v1647
      %v1649 = vmul.f32 %v1646, %v1648
      %v1650 = vadd.f32 %v1646, %v1649
      %vm1651 = vweird.f32 %v1630
      %vm1652 = vweird.f32 %v1646
      %vm1653 = vmor %vm1651, %vm1652
      %v1654 = vsel %vm1653, %v1646, %v1650
      %v1655 = vand.u32 2147483647, %v1630
      %vm1656 = vcmp.eq.f32.partialorder %v1655, 8.507059e+37
      %v1657 = vand.u32 %v1630, 2147483648
      %v1658 = vor.u32 1.1754944e-38, %v1657
      %v1659 = vsel %vm1656, %v1658, %v1654
      %v1660 = vmul.f32 1.0, %v1659
      %v1661 = vrcp.pop %v1631
      %v1662 = vmul.f32 %v1631, %v1661
      %v1663 = vsub.f32 1.0, %v1662
      %v1664 = vmul.f32 %v1661, %v1663
      %v1665 = vadd.f32 %v1661, %v1664
      %vm1666 = vweird.f32 %v1631
      %vm1667 = vweird.f32 %v1661
      %vm1668 = vmor %vm1666, %vm1667
      %v1669 = vsel %vm1668, %v1661, %v1665
      %v1670 = vand.u32 2147483647, %v1631
      %vm1671 = vcmp.eq.f32.partialorder %v1670, 8.507059e+37
      %v1672 = vand.u32 %v1631, 2147483648
      %v1673 = vor.u32 1.1754944e-38, %v1672
      %v1674 = vsel %vm1671, %v1673, %v1669
      %v1675 = vmul.f32 1.0, %v1674
      %v1676 = vrcp.pop %v1632
      %v1677 = vmul.f32 %v1632, %v1676
      %v1678 = vsub.f32 1.0, %v1677
      %v1679 = vmul.f32 %v1676, %v1678
      %v1680 = vadd.f32 %v1676, %v1679
      %vm1681 = vweird.f32 %v1632
      %vm1682 = vweird.f32 %v1676
      %vm1683 = vmor %vm1681, %vm1682
      %v1684 = vsel %vm1683, %v1676, %v1680
      %v1685 = vand.u32 2147483647, %v1632
      %vm1686 = vcmp.eq.f32.partialorder %v1685, 8.507059e+37
      %v1687 = vand.u32 %v1632, 2147483648
      %v1688 = vor.u32 1.1754944e-38, %v1687
      %v1689 = vsel %vm1686, %v1688, %v1684
      %v1690 = vmul.f32 1.0, %v1689
      %v1691 = vrcp.pop %v1633
      %v1692 = vmul.f32 %v1633, %v1691
      %v1693 = vsub.f32 1.0, %v1692
      %v1694 = vmul.f32 %v1691, %v1693
      %v1695 = vadd.f32 %v1691, %v1694
      %vm1696 = vweird.f32 %v1633
      %vm1697 = vweird.f32 %v1691
      %vm1698 = vmor %vm1696, %vm1697
      %v1699 = vsel %vm1698, %v1691, %v1695
      %v1700 = vand.u32 2147483647, %v1633
      %vm1701 = vcmp.eq.f32.partialorder %v1700, 8.507059e+37
      %v1702 = vand.u32 %v1633, 2147483648
      %v1703 = vor.u32 1.1754944e-38, %v1702
      %v1704 = vsel %vm1701, %v1703, %v1699
      %v1705 = vmul.f32 1.0, %v1704
      %v1706 = vrcp.pop %v1634
      %v1707 = vmul.f32 %v1634, %v1706
      %v1708 = vsub.f32 1.0, %v1707
      %v1709 = vmul.f32 %v1706, %v1708
      %v1710 = vadd.f32 %v1706, %v1709
      %vm1711 = vweird.f32 %v1634
      %vm1712 = vweird.f32 %v1706
      %vm1713 = vmor %vm1711, %vm1712
      %v1714 = vsel %vm1713, %v1706, %v1710
      %v1715 = vand.u32 2147483647, %v1634
      %vm1716 = vcmp.eq.f32.partialorder %v1715, 8.507059e+37
      %v1717 = vand.u32 %v1634, 2147483648
      %v1718 = vor.u32 1.1754944e-38, %v1717
      %v1719 = vsel %vm1716, %v1718, %v1714
      %v1720 = vmul.f32 1.0, %v1719
      %v1721 = vrcp.pop %v1635
      %v1722 = vmul.f32 %v1635, %v1721
      %v1723 = vsub.f32 1.0, %v1722
      %v1724 = vmul.f32 %v1721, %v1723
      %v1725 = vadd.f32 %v1721, %v1724
      %vm1726 = vweird.f32 %v1635
      %vm1727 = vweird.f32 %v1721
      %vm1728 = vmor %vm1726, %vm1727
      %v1729 = vsel %vm1728, %v1721, %v1725
      %v1730 = vand.u32 2147483647, %v1635
      %vm1731 = vcmp.eq.f32.partialorder %v1730, 8.507059e+37
      %v1732 = vand.u32 %v1635, 2147483648
      %v1733 = vor.u32 1.1754944e-38, %v1732
      %v1734 = vsel %vm1731, %v1733, %v1729
      %v1735 = vmul.f32 1.0, %v1734
      %v1736 = vrcp.pop %v1636
      %v1737 = vmul.f32 %v1636, %v1736
      %v1738 = vsub.f32 1.0, %v1737
      %v1739 = vmul.f32 %v1736, %v1738
      %v1740 = vadd.f32 %v1736, %v1739
      %vm1741 = vweird.f32 %v1636
      %vm1742 = vweird.f32 %v1736
      %vm1743 = vmor %vm1741, %vm1742
      %v1744 = vsel %vm1743, %v1736, %v1740
      %v1745 = vand.u32 2147483647, %v1636
      %vm1746 = vcmp.eq.f32.partialorder %v1745, 8.507059e+37
      %v1747 = vand.u32 %v1636, 2147483648
      %v1748 = vor.u32 1.1754944e-38, %v1747
      %v1749 = vsel %vm1746, %v1748, %v1744
      %v1750 = vmul.f32 1.0, %v1749
      %v1751 = vrcp.pop %v1637
      %v1752 = vmul.f32 %v1637, %v1751
      %v1753 = vsub.f32 1.0, %v1752
      %v1754 = vmul.f32 %v1751, %v1753
      %v1755 = vadd.f32 %v1751, %v1754
      %vm1756 = vweird.f32 %v1637
      %vm1757 = vweird.f32 %v1751
      %vm1758 = vmor %vm1756, %vm1757
      %v1759 = vsel %vm1758, %v1751, %v1755
      %v1760 = vand.u32 2147483647, %v1637
      %vm1761 = vcmp.eq.f32.partialorder %v1760, 8.507059e+37
      %v1762 = vand.u32 %v1637, 2147483648
      %v1763 = vor.u32 1.1754944e-38, %v1762
      %v1764 = vsel %vm1761, %v1763, %v1759
      %v1765 = vmul.f32 1.0, %v1764
      %v1766 = vrcp.pop %v1638
      %v1767 = vmul.f32 %v1638, %v1766
      %v1768 = vsub.f32 1.0, %v1767
      %v1769 = vmul.f32 %v1766, %v1768
      %v1770 = vadd.f32 %v1766, %v1769
      %vm1771 = vweird.f32 %v1638
      %vm1772 = vweird.f32 %v1766
      %vm1773 = vmor %vm1771, %vm1772
      %v1774 = vsel %vm1773, %v1766, %v1770
      %v1775 = vand.u32 2147483647, %v1638
      %vm1776 = vcmp.eq.f32.partialorder %v1775, 8.507059e+37
      %v1777 = vand.u32 %v1638, 2147483648
      %v1778 = vor.u32 1.1754944e-38, %v1777
      %v1779 = vsel %vm1776, %v1778, %v1774
      %v1780 = vmul.f32 1.0, %v1779
      %v1781 = vrcp.pop %v1639
      %v1782 = vmul.f32 %v1639, %v1781
      %v1783 = vsub.f32 1.0, %v1782
      %v1784 = vmul.f32 %v1781, %v1783
      %v1785 = vadd.f32 %v1781, %v1784
      %vm1786 = vweird.f32 %v1639
      %vm1787 = vweird.f32 %v1781
      %vm1788 = vmor %vm1786, %vm1787
      %v1789 = vsel %vm1788, %v1781, %v1785
      %v1790 = vand.u32 2147483647, %v1639
      %vm1791 = vcmp.eq.f32.partialorder %v1790, 8.507059e+37
      %v1792 = vand.u32 %v1639, 2147483648
      %v1793 = vor.u32 1.1754944e-38, %v1792
      %v1794 = vsel %vm1791, %v1793, %v1789
      %v1795 = vmul.f32 1.0, %v1794
      %v1796 = vrcp.pop %v1640
      %v1797 = vmul.f32 %v1640, %v1796
      %v1798 = vsub.f32 1.0, %v1797
      %v1799 = vmul.f32 %v1796, %v1798
      %v1800 = vadd.f32 %v1796, %v1799
      %vm1801 = vweird.f32 %v1640
      %vm1802 = vweird.f32 %v1796
      %vm1803 = vmor %vm1801, %vm1802
      %v1804 = vsel %vm1803, %v1796, %v1800
      %v1805 = vand.u32 2147483647, %v1640
      %vm1806 = vcmp.eq.f32.partialorder %v1805, 8.507059e+37
      %v1807 = vand.u32 %v1640, 2147483648
      %v1808 = vor.u32 1.1754944e-38, %v1807
      %v1809 = vsel %vm1806, %v1808, %v1804
      %v1810 = vmul.f32 1.0, %v1809
      %v1811 = vrcp.pop %v1641
      %v1812 = vmul.f32 %v1641, %v1811
      %v1813 = vsub.f32 1.0, %v1812
      %v1814 = vmul.f32 %v1811, %v1813
      %v1815 = vadd.f32 %v1811, %v1814
      %vm1816 = vweird.f32 %v1641
      %vm1817 = vweird.f32 %v1811
      %vm1818 = vmor %vm1816, %vm1817
      %v1819 = vsel %vm1818, %v1811, %v1815
      %v1820 = vand.u32 2147483647, %v1641
      %vm1821 = vcmp.eq.f32.partialorder %v1820, 8.507059e+37
      %v1822 = vand.u32 %v1641, 2147483648
      %v1823 = vor.u32 1.1754944e-38, %v1822
      %v1824 = vsel %vm1821, %v1823, %v1819
      %v1825 = vmul.f32 1.0, %v1824
      %v1826 = vrcp.pop %v1642
      %v1827 = vmul.f32 %v1642, %v1826
      %v1828 = vsub.f32 1.0, %v1827
      %v1829 = vmul.f32 %v1826, %v1828
      %v1830 = vadd.f32 %v1826, %v1829
      %vm1831 = vweird.f32 %v1642
      %vm1832 = vweird.f32 %v1826
      %vm1833 = vmor %vm1831, %vm1832
      %v1834 = vsel %vm1833, %v1826, %v1830
      %v1835 = vand.u32 2147483647, %v1642
      %vm1836 = vcmp.eq.f32.partialorder %v1835, 8.507059e+37
      %v1837 = vand.u32 %v1642, 2147483648
      %v1838 = vor.u32 1.1754944e-38, %v1837
      %v1839 = vsel %vm1836, %v1838, %v1834
      %v1840 = vmul.f32 1.0, %v1839
      %v1841 = vrcp.pop %v1643
      %v1842 = vmul.f32 %v1643, %v1841
      %v1843 = vsub.f32 1.0, %v1842
      %v1844 = vmul.f32 %v1841, %v1843
      %v1845 = vadd.f32 %v1841, %v1844
      %vm1846 = vweird.f32 %v1643
      %vm1847 = vweird.f32 %v1841
      %vm1848 = vmor %vm1846, %vm1847
      %v1849 = vsel %vm1848, %v1841, %v1845
      %v1850 = vand.u32 2147483647, %v1643
      %vm1851 = vcmp.eq.f32.partialorder %v1850, 8.507059e+37
      %v1852 = vand.u32 %v1643, 2147483648
      %v1853 = vor.u32 1.1754944e-38, %v1852
      %v1854 = vsel %vm1851, %v1853, %v1849
      %v1855 = vmul.f32 1.0, %v1854
      %v1856 = vrcp.pop %v1644
      %v1857 = vmul.f32 %v1644, %v1856
      %v1858 = vsub.f32 1.0, %v1857
      %v1859 = vmul.f32 %v1856, %v1858
      %v1860 = vadd.f32 %v1856, %v1859
      %vm1861 = vweird.f32 %v1644
      %vm1862 = vweird.f32 %v1856
      %vm1863 = vmor %vm1861, %vm1862
      %v1864 = vsel %vm1863, %v1856, %v1860
      %v1865 = vand.u32 2147483647, %v1644
      %vm1866 = vcmp.eq.f32.partialorder %v1865, 8.507059e+37
      %v1867 = vand.u32 %v1644, 2147483648
      %v1868 = vor.u32 1.1754944e-38, %v1867
      %v1869 = vsel %vm1866, %v1868, %v1864
      %v1870 = vmul.f32 1.0, %v1869
      %v1871 = vrcp.pop %v1645
      %v1872 = vmul.f32 %v1645, %v1871
      %v1873 = vsub.f32 1.0, %v1872
      %v1874 = vmul.f32 %v1871, %v1873
      %v1875 = vadd.f32 %v1871, %v1874
      %vm1876 = vweird.f32 %v1645
      %vm1877 = vweird.f32 %v1871
      %vm1878 = vmor %vm1876, %vm1877
      %v1879 = vsel %vm1878, %v1871, %v1875
      %v1880 = vand.u32 2147483647, %v1645
      %vm1881 = vcmp.eq.f32.partialorder %v1880, 8.507059e+37
      %v1882 = vand.u32 %v1645, 2147483648
      %v1883 = vor.u32 1.1754944e-38, %v1882
      %v1884 = vsel %vm1881, %v1883, %v1879
      %v1885 = vmul.f32 1.0, %v1884
      %v1886 = vlaneseq
      %v1887 = vand.u32 %v1886, 127
      %vm1888 = vcmp.eq.s32.totalorder %v1887, 0
      %v1889 = vsel %vm1888, %v1536, 0.0
      %v1890 = vsel %vm1888, %v1539, 0.0
      %v1891 = vsel %vm1888, %v1542, 0.0
      %v1892 = vsel %vm1888, %v1545, 0.0
      %v1893 = vsel %vm1888, %v1548, 0.0
      %v1894 = vsel %vm1888, %v1551, 0.0
      %v1895 = vsel %vm1888, %v1554, 0.0
      %v1896 = vsel %vm1888, %v1557, 0.0
      %v1897 = vsel %vm1888, %v1560, 0.0
      %v1898 = vsel %vm1888, %v1563, 0.0
      %v1899 = vsel %vm1888, %v1566, 0.0
      %v1900 = vsel %vm1888, %v1569, 0.0
      %v1901 = vsel %vm1888, %v1572, 0.0
      %v1902 = vsel %vm1888, %v1575, 0.0
      %v1903 = vsel %vm1888, %v1578, 0.0
      %v1904 = vsel %vm1888, %v1581, 0.0
      %vm1905 = vcmp.eq.s32.totalorder %v1887, 1
      %v1906 = vsel %vm1905, %v1660, 0.0
      %v1907 = vsel %vm1905, %v1675, 0.0
      %v1908 = vsel %vm1905, %v1690, 0.0
      %v1909 = vsel %vm1905, %v1705, 0.0
      %v1910 = vsel %vm1905, %v1720, 0.0
      %v1911 = vsel %vm1905, %v1735, 0.0
      %v1912 = vsel %vm1905, %v1750, 0.0
      %v1913 = vsel %vm1905, %v1765, 0.0
      %v1914 = vsel %vm1905, %v1780, 0.0
      %v1915 = vsel %vm1905, %v1795, 0.0
      %v1916 = vsel %vm1905, %v1810, 0.0
      %v1917 = vsel %vm1905, %v1825, 0.0
      %v1918 = vsel %vm1905, %v1840, 0.0
      %v1919 = vsel %vm1905, %v1855, 0.0
      %v1920 = vsel %vm1905, %v1870, 0.0
      %v1921 = vsel %vm1905, %v1885, 0.0
      %v1922 = vadd.f32 %v1889, %v1906
      %v1923 = vadd.f32 %v1890, %v1907
      %v1924 = vadd.f32 %v1891, %v1908
      %v1925 = vadd.f32 %v1892, %v1909
      %v1926 = vadd.f32 %v1893, %v1910
      %v1927 = vadd.f32 %v1894, %v1911
      %v1928 = vadd.f32 %v1895, %v1912
      %v1929 = vadd.f32 %v1896, %v1913
      %v1930 = vadd.f32 %v1897, %v1914
      %v1931 = vadd.f32 %v1898, %v1915
      %v1932 = vadd.f32 %v1899, %v1916
      %v1933 = vadd.f32 %v1900, %v1917
      %v1934 = vadd.f32 %v1901, %v1918
      %v1935 = vadd.f32 %v1902, %v1919
      %v1936 = vadd.f32 %v1903, %v1920
      %v1937 = vadd.f32 %v1904, %v1921
      %1954 = vrot.lane.b32.xlu0 %v1922, 96
      %v1955 = vpop.permute.xlu0 %1954
      %1956 = vrot.lane.b32.xlu0 %v1923, 96
      %v1957 = vpop.permute.xlu0 %1956
      %1958 = vrot.lane.b32.xlu0 %v1924, 96
      %v1959 = vpop.permute.xlu0 %1958
      %1960 = vrot.lane.b32.xlu0 %v1925, 96
      %v1961 = vpop.permute.xlu0 %1960
      %1962 = vrot.lane.b32.xlu0 %v1926, 96
      %v1963 = vpop.permute.xlu0 %1962
      %1964 = vrot.lane.b32.xlu0 %v1927, 96
      %v1965 = vpop.permute.xlu0 %1964
      %1966 = vrot.lane.b32.xlu0 %v1928, 96
      %v1967 = vpop.permute.xlu0 %1966
      %1968 = vrot.lane.b32.xlu0 %v1929, 96
      %v1969 = vpop.permute.xlu0 %1968
      %1970 = vrot.lane.b32.xlu0 %v1930, 96
      %v1971 = vpop.permute.xlu0 %1970
      %1972 = vrot.lane.b32.xlu0 %v1931, 96
      %v1973 = vpop.permute.xlu0 %1972
      %1974 = vrot.lane.b32.xlu0 %v1932, 96
      %v1975 = vpop.permute.xlu0 %1974
      %1976 = vrot.lane.b32.xlu0 %v1933, 96
      %v1977 = vpop.permute.xlu0 %1976
      %1978 = vrot.lane.b32.xlu0 %v1934, 96
      %v1979 = vpop.permute.xlu0 %1978
      %1980 = vrot.lane.b32.xlu0 %v1935, 96
      %v1981 = vpop.permute.xlu0 %1980
      %1982 = vrot.lane.b32.xlu0 %v1936, 96
      %v1983 = vpop.permute.xlu0 %1982
      %1984 = vrot.lane.b32.xlu0 %v1937, 96
      %v1985 = vpop.permute.xlu0 %1984
      %v2002 = vsel %vm1533, %v1497, %v1955
      %v2003 = vsel %vm1533, %v1498, %v1957
      %v2004 = vsel %vm1533, %v1499, %v1959
      %v2005 = vsel %vm1533, %v1500, %v1961
      %v2006 = vsel %vm1533, %v1501, %v1963
      %v2007 = vsel %vm1533, %v1502, %v1965
      %v2008 = vsel %vm1533, %v1503, %v1967
      %v2009 = vsel %vm1533, %v1504, %v1969
      %v2010 = vsel %vm1533, %v1505, %v1971
      %v2011 = vsel %vm1533, %v1506, %v1973
      %v2012 = vsel %vm1533, %v1507, %v1975
      %v2013 = vsel %vm1533, %v1508, %v1977
      %v2014 = vsel %vm1533, %v1509, %v1979
      %v2015 = vsel %vm1533, %v1510, %v1981
      %v2016 = vsel %vm1533, %v1511, %v1983
      %v2017 = vsel %vm1533, %v1512, %v1985
      %2018 = vst [vmem:[%s460] sm:$0xff] %v2002
      %2019 = vst [vmem:[%s460 + $0x8] sm:$0xff] %v2003
      %2020 = vst [vmem:[%s460 + $0x10] sm:$0xff] %v2004
      %2021 = vst [vmem:[%s460 + $0x18] sm:$0xff] %v2005
      %2022 = vst [vmem:[%s460 + $0x20] sm:$0xff] %v2006
      %2023 = vst [vmem:[%s460 + $0x28] sm:$0xff] %v2007
      %2024 = vst [vmem:[%s460 + $0x30] sm:$0xff] %v2008
      %2025 = vst [vmem:[%s460 + $0x38] sm:$0xff] %v2009
      %2026 = vst [vmem:[%s460 + $0x40] sm:$0xff] %v2010
      %2027 = vst [vmem:[%s460 + $0x48] sm:$0xff] %v2011
      %2028 = vst [vmem:[%s460 + $0x50] sm:$0xff] %v2012
      %2029 = vst [vmem:[%s460 + $0x58] sm:$0xff] %v2013
      %2030 = vst [vmem:[%s460 + $0x60] sm:$0xff] %v2014
      %2031 = vst [vmem:[%s460 + $0x68] sm:$0xff] %v2015
      %2032 = vst [vmem:[%s460 + $0x70] sm:$0xff] %v2016
      %2033 = vst [vmem:[%s460 + $0x78] sm:$0xff] %v2017
      %p2034 = scmp.lt.s32.totalorder %s24, 1
      %s2035 = scalar_select %p2034, %s24, 1
      %s2036 = smul.addr %s2035, 16
      %s2037 = smul.addr %s2036, 8
      %s2038 = scalar_lea.vmem %s13, %s2037
      // Predicated region
      $region73: #{gcn_net2_forward_batched.1} parent=71 // pred_check
        %p2039 = pneg %p325
      $region74: #{gcn_net2_forward_batched.1} parent=71 // pred_check_branch
        %2041 = sbr.rel (%p2039) target = $region76
      $region75: #{gcn_net2_forward_batched.1} parent=71 // pred_region
        _
      $region76: #{gcn_net2_forward_batched.1} parent=71 // pred_fallthru
        _
    $region72: #{gcn_net2_forward_batched.1} parent=5 // pred_fallthru
      _
    %p2042 = scmp.le.s32.totalorder 2, %s19
    // Predicated region
    $region77: #{gcn_net2_forward_batched.1} parent=5 // pred_check
      %p2043 = pneg %p2042
    $region78: #{gcn_net2_forward_batched.1} parent=5 // pred_check_branch
      %2045 = sbr.rel (%p2043) target = $region80
    $region79: #{gcn_net2_forward_batched.1} parent=5 // pred_region
      %s2046 = ssub.s32 %s19, 2
      // Predicated region
      $region81: #{gcn_net2_forward_batched.1} parent=79 // pred_check
        %p2047 = pneg %p331
      $region82: #{gcn_net2_forward_batched.1} parent=79 // pred_check_branch
        %2049 = sbr.rel (%p2047) target = $region84
      $region83: #{gcn_net2_forward_batched.1} parent=79 // pred_region
        %p2050 = scmp.lt.s32.totalorder %s25, 1
        %s2051 = scalar_select %p2050, %s25, 1
        %s2052 = smul.addr %s2051, 16
        %s2053 = smul.addr %s2052, 8
        %s2054 = scalar_lea.vmem %s13, %s2053
      $region84: #{gcn_net2_forward_batched.1} parent=79 // pred_fallthru
        _
    $region80: #{gcn_net2_forward_batched.1} parent=5 // pred_fallthru
      _
  $region6: #{gcn_net2_forward_batched.1} parent=0 // loop_footer
    %s23 = sadd.s32 1, %s19
  $region7: #{gcn_net2_forward_batched.1} parent=0 // loop_footer_branch
    %18 = sbr.rel target = $region3
  $region8: #{gcn_net2_forward_batched.1} parent=0 // loop_exit
    _

</llo_original>
